<compile_context>
chip_gen: v7x
topology: tpu7x:2x2x1
jax: 0.10.0
libtpu: 0.0.40
codegen_flags: <defaults>
</compile_context>

<pallas_src>
import math

import jax
import jax.numpy as jnp
from jax import lax
from jax.experimental import pallas as pl
from jax.experimental.pallas import tpu as pltpu

# Small, module-consistent shapes (dmodel divisible by nhead).
NHEAD = 4
DMODEL = 32
DK = DMODEL // NHEAD
DV = DMODEL // NHEAD
BATCH = 2
SEQ = 8


def _make_mha_kernel(B, S, H, dk, dv):
    BS = B * S
    BHS = B * H * S

    def kernel(q_ref, k_ref, v_ref, wq_ref, wk_ref, wv_ref, wo_ref, o_ref):
        f32 = jnp.float32

        # --- fused Q/K/V projections: all batches & heads in 3 MXU dots -----
        qp = jnp.dot(q_ref[...], wq_ref[...], preferred_element_type=f32)  # [BS, H*dk] (scale folded in)
        kp = jnp.dot(k_ref[...], wk_ref[...], preferred_element_type=f32)  # [BS, H*dk]
        vp = jnp.dot(v_ref[...], wv_ref[...], preferred_element_type=f32)  # [BS, H*dv]

        # Per-head column masks (VPU selects; dk == dv here). Using masks keeps
        # all slicing sublane-aligned (no lane-offset value slices).
        col = lax.broadcasted_iota(jnp.int32, (BS, H * dk), 1)
        qm = [qp * ((col >= h * dk) & (col < (h + 1) * dk)).astype(f32) for h in range(H)]
        vm = [vp * ((col >= h * dv) & (col < (h + 1) * dv)).astype(f32) for h in range(H)]

        # --- per (batch, head) attention; B*H = 8 small blocks, static unroll
        head_blocks = []  # row order (b, h, s)  ->  row (b*H + h)*S + s
        for b in range(B):
            r0 = b * S
            kb = kp[r0:r0 + S, :]                         # sublane-aligned slice
            for h in range(H):
                qb = qm[h][r0:r0 + S, :]
                vb = vm[h][r0:r0 + S, :]
                # (Qi/sqrt(dk)) @ Ki^T: masked-out columns contribute exactly 0.
                scores = lax.dot_general(qb, kb, (((1,), (1,)), ((), ())),
                                         preferred_element_type=f32)      # [S, S]
                mx = jnp.max(scores, axis=-1, keepdims=True)
                e = jnp.exp(scores - mx)
                attn = e * pl.reciprocal(jnp.sum(e, axis=-1, keepdims=True),
                                         approx=True)
                # TODO(synk): nn.Dropout(p=0.1) on attn treated as identity
                # (eval mode); PyTorch RNG dropout has no bit-exact equivalent.
                # Head values land in column block h of an [S, H*dv] tile (rest 0).
                head_blocks.append(jnp.dot(attn, vb, preferred_element_type=f32))

        m_wide = jnp.concatenate(head_blocks, axis=0)     # [B*H*S, H*dv]

        # --- torch raw regroup [B,H,S,dv] -> [B*S, H*dv], fused with the WO dot.
        # concat[R, j*dv + v] = heads_flat[H*R + j, v].  Implemented as H 0/1
        # row-selection matmuls (P_j @ m_wide) + one wide [BS, H*H*dv] @ [H*H*dv, D]
        # dot against the host-side expanded WO (block j of WO replicated per head
        # slot), which avoids any lane-changing reshape inside the kernel.
        r_idx = lax.broadcasted_iota(jnp.int32, (BS, BHS), 0)
        c_idx = lax.broadcasted_iota(jnp.int32, (BS, BHS), 1)
        gathered = []
        for j in range(H):
            p_j = (c_idx == H * r_idx + j).astype(f32)                         # [BS, BHS]
            gathered.append(jnp.dot(p_j, m_wide, preferred_element_type=f32))  # [BS, H*dv]
        g_cat = jnp.concatenate(gathered, axis=1)                              # [BS, H*H*dv]
        o_ref[...] = jnp.dot(g_cat, wo_ref[...],
                             preferred_element_type=f32).astype(o_ref.dtype)

    return kernel


@jax.jit
def multi_head_attention(Q, K, V, WQ, WK, WV, WO):
    B, S, D = Q.shape
    H, _, dk = WQ.shape
    dv = WV.shape[-1]
    scale = 1.0 / math.sqrt(float(dk))

    # Host-side weight prep (tiny one-time transforms, done by XLA outside the
    # kernel): [H, D, dk] -> [D, H*dk] so one dot projects all heads at once;
    # the softmax scale is folded into the Q-projection weight.
    WQc = (jnp.transpose(WQ, (1, 0, 2)) * scale).reshape(D, H * dk)
    WKc = jnp.transpose(WK, (1, 0, 2)).reshape(D, H * dk)
    WVc = jnp.transpose(WV, (1, 0, 2)).reshape(D, H * dv)
    # Expanded WO for the raw-regroup trick: row (j*H*dv + h*dv + v) = WO[j*dv + v].
    WO_big = jnp.concatenate(
        [jnp.tile(WO[j * dv:(j + 1) * dv, :], (H, 1)) for j in range(H)],
        axis=0)                                            # [H*H*dv, D]

    Qf = Q.reshape(B * S, D)
    Kf = K.reshape(B * S, D)
    Vf = V.reshape(B * S, D)

    kernel = _make_mha_kernel(B, S, H, dk, dv)
    out_flat = pl.pallas_call(
        kernel,
        out_shape=jax.ShapeDtypeStruct((B * S, D), jnp.float32),
        grid=(1,),  # single step: everything fits in VMEM; minimizes per-step overhead
        in_specs=[
            pl.BlockSpec((B * S, D), lambda i: (0, 0)),
            pl.BlockSpec((B * S, D), lambda i: (0, 0)),
            pl.BlockSpec((B * S, D), lambda i: (0, 0)),
            pl.BlockSpec((D, H * dk), lambda i: (0, 0)),
            pl.BlockSpec((D, H * dk), lambda i: (0, 0)),
            pl.BlockSpec((D, H * dv), lambda i: (0, 0)),
            pl.BlockSpec((H * H * dv, D), lambda i: (0, 0)),
        ],
        out_specs=pl.BlockSpec((B * S, D), lambda i: (0, 0)),
        compiler_params=pltpu.CompilerParams(dimension_semantics=("arbitrary",)),
    )(Qf, Kf, Vf, WQc, WKc, WVc, WO_big)

    return out_flat.reshape(B, S, D), None


def reference(Q, K, V, WQ, WK, WV, WO):
    # Pure-JAX mirror of the PyTorch forward (dropout as identity / eval mode),
    # including the module's raw reshape of [B,H,S,dv] into [B,S,H*dv].
    B, S, _ = Q.shape
    H, _, dk = WQ.shape
    dv = WV.shape[-1]
    Qi = jnp.einsum('bsd,hdk->bhsk', Q, WQ)
    Ki = jnp.einsum('bsd,hdk->bhsk', K, WK)
    Vi = jnp.einsum('bsd,hdv->bhsv', V, WV)
    scores = jnp.einsum('bhsk,bhtk->bhst', Qi, Ki) / math.sqrt(float(dk))
    attn = jax.nn.softmax(scores, axis=-1)
    heads = jnp.einsum('bhst,bhtv->bhsv', attn, Vi)        # [B, H, S, dv]
    concat = heads.reshape(B, S, H * dv)                   # torch-style raw reshape
    return concat @ WO


if __name__ == "__main__":
    key = jax.random.PRNGKey(0)
    kq, kk, kv, kwq, kwk, kwv, kwo = jax.random.split(key, 7)

    initrange = 0.1  # matches init_weights(): uniform(-0.1, 0.1)
    WQ = jax.random.uniform(kwq, (NHEAD, DMODEL, DK), jnp.float32, -initrange, initrange)
    WK = jax.random.uniform(kwk, (NHEAD, DMODEL, DK), jnp.float32, -initrange, initrange)
    WV = jax.random.uniform(kwv, (NHEAD, DMODEL, DV), jnp.float32, -initrange, initrange)
    WO = jax.random.uniform(kwo, (NHEAD * DV, DMODEL), jnp.float32, -initrange, initrange)

    Q = jax.random.normal(kq, (BATCH, SEQ, DMODEL), jnp.float32)
    K = jax.random.normal(kk, (BATCH, SEQ, DMODEL), jnp.float32)
    V = jax.random.normal(kv, (BATCH, SEQ, DMODEL), jnp.float32)

    out, _ = multi_head_attention(Q, K, V, WQ, WK, WV, WO)
    out = jax.block_until_ready(out)

    ref = reference(Q, K, V, WQ, WK, WV, WO)
    assert out.shape == (BATCH, SEQ, DMODEL)
    # Tolerance allows for the EUP approximate reciprocal in the softmax
    # normalization; any structural error would be orders of magnitude larger.
    assert jnp.allclose(out, ref, atol=5e-3, rtol=5e-3), "mismatch vs reference"

    print("KERNEL_OK")
</pallas_src>

<mosaic_0001>
module attributes {stable_mosaic.version = 11 : i64} {
  func.func @kernel(%arg0: i32, %arg1: memref<16x32xf32, #tpu.memory_space<vmem>>, %arg2: memref<16x32xf32, #tpu.memory_space<vmem>>, %arg3: memref<16x32xf32, #tpu.memory_space<vmem>>, %arg4: memref<32x32xf32, #tpu.memory_space<vmem>>, %arg5: memref<32x32xf32, #tpu.memory_space<vmem>>, %arg6: memref<32x32xf32, #tpu.memory_space<vmem>>, %arg7: memref<128x32xf32, #tpu.memory_space<vmem>>, %arg8: memref<16x32xf32, #tpu.memory_space<vmem>>) attributes {dimension_semantics = [#tpu.dimension_semantics<arbitrary>], iteration_bounds = array<i64: 1>, scalar_prefetch = 0 : i64, scratch_operands = 0 : i64, tpu.core_type = #tpu.core_type<tc>, window_params = [{pipeline_mode = #tpu.pipeline_mode<synchronous>, transform_indices = @transform_0, window_bounds = array<i64: 16, 32>}, {pipeline_mode = #tpu.pipeline_mode<synchronous>, transform_indices = @transform_1, window_bounds = array<i64: 16, 32>}, {pipeline_mode = #tpu.pipeline_mode<synchronous>, transform_indices = @transform_2, window_bounds = array<i64: 16, 32>}, {pipeline_mode = #tpu.pipeline_mode<synchronous>, transform_indices = @transform_3, window_bounds = array<i64: 32, 32>}, {pipeline_mode = #tpu.pipeline_mode<synchronous>, transform_indices = @transform_4, window_bounds = array<i64: 32, 32>}, {pipeline_mode = #tpu.pipeline_mode<synchronous>, transform_indices = @transform_5, window_bounds = array<i64: 32, 32>}, {pipeline_mode = #tpu.pipeline_mode<synchronous>, transform_indices = @transform_6, window_bounds = array<i64: 128, 32>}, {pipeline_mode = #tpu.pipeline_mode<synchronous>, transform_indices = @transform_7, window_bounds = array<i64: 16, 32>}]} {
    %c0 = arith.constant 0 : index
    %c0_0 = arith.constant 0 : index
    %0 = vector.load %arg1[%c0, %c0_0] : memref<16x32xf32, #tpu.memory_space<vmem>>, vector<16x32xf32>
    %c0_1 = arith.constant 0 : index
    %c0_2 = arith.constant 0 : index
    %1 = vector.load %arg4[%c0_1, %c0_2] : memref<32x32xf32, #tpu.memory_space<vmem>>, vector<32x32xf32>
    %cst = arith.constant dense<0.000000e+00> : vector<16x32xf32>
    %2 = tpu.matmul %0, %1, %cst {dimension_numbers = #tpu.dot_dimension_numbers<[1], [0], [0], [1], [0, 0, 1, 1], [], []>} : vector<16x32xf32>, vector<32x32xf32>, vector<16x32xf32> -> vector<16x32xf32>
    %c0_3 = arith.constant 0 : index
    %c0_4 = arith.constant 0 : index
    %3 = vector.load %arg2[%c0_3, %c0_4] : memref<16x32xf32, #tpu.memory_space<vmem>>, vector<16x32xf32>
    %c0_5 = arith.constant 0 : index
    %c0_6 = arith.constant 0 : index
    %4 = vector.load %arg5[%c0_5, %c0_6] : memref<32x32xf32, #tpu.memory_space<vmem>>, vector<32x32xf32>
    %cst_7 = arith.constant dense<0.000000e+00> : vector<16x32xf32>
    %5 = tpu.matmul %3, %4, %cst_7 {dimension_numbers = #tpu.dot_dimension_numbers<[1], [0], [0], [1], [0, 0, 1, 1], [], []>} : vector<16x32xf32>, vector<32x32xf32>, vector<16x32xf32> -> vector<16x32xf32>
    %c0_8 = arith.constant 0 : index
    %c0_9 = arith.constant 0 : index
    %6 = vector.load %arg3[%c0_8, %c0_9] : memref<16x32xf32, #tpu.memory_space<vmem>>, vector<16x32xf32>
    %c0_10 = arith.constant 0 : index
    %c0_11 = arith.constant 0 : index
    %7 = vector.load %arg6[%c0_10, %c0_11] : memref<32x32xf32, #tpu.memory_space<vmem>>, vector<32x32xf32>
    %cst_12 = arith.constant dense<0.000000e+00> : vector<16x32xf32>
    %8 = tpu.matmul %6, %7, %cst_12 {dimension_numbers = #tpu.dot_dimension_numbers<[1], [0], [0], [1], [0, 0, 1, 1], [], []>} : vector<16x32xf32>, vector<32x32xf32>, vector<16x32xf32> -> vector<16x32xf32>
    %9 = tpu.iota {dimensions = array<i32: 1>} : vector<16x32xi32>
    %c0_i32 = arith.constant 0 : i32
    %10 = vector.broadcast %c0_i32 : i32 to vector<16x32xi32>
    %11 = arith.cmpi sge, %9, %10 : vector<16x32xi32>
    %c8_i32 = arith.constant 8 : i32
    %12 = vector.broadcast %c8_i32 : i32 to vector<16x32xi32>
    %13 = arith.cmpi slt, %9, %12 : vector<16x32xi32>
    %14 = arith.andi %11, %13 : vector<16x32xi1>
    %15 = arith.extui %14 : vector<16x32xi1> to vector<16x32xi32>
    %16 = arith.sitofp %15 : vector<16x32xi32> to vector<16x32xf32>
    %17 = arith.mulf %2, %16 : vector<16x32xf32>
    %c8_i32_13 = arith.constant 8 : i32
    %18 = vector.broadcast %c8_i32_13 : i32 to vector<16x32xi32>
    %19 = arith.cmpi sge, %9, %18 : vector<16x32xi32>
    %c16_i32 = arith.constant 16 : i32
    %20 = vector.broadcast %c16_i32 : i32 to vector<16x32xi32>
    %21 = arith.cmpi slt, %9, %20 : vector<16x32xi32>
    %22 = arith.andi %19, %21 : vector<16x32xi1>
    %23 = arith.extui %22 : vector<16x32xi1> to vector<16x32xi32>
    %24 = arith.sitofp %23 : vector<16x32xi32> to vector<16x32xf32>
    %25 = arith.mulf %2, %24 : vector<16x32xf32>
    %c16_i32_14 = arith.constant 16 : i32
    %26 = vector.broadcast %c16_i32_14 : i32 to vector<16x32xi32>
    %27 = arith.cmpi sge, %9, %26 : vector<16x32xi32>
    %c24_i32 = arith.constant 24 : i32
    %28 = vector.broadcast %c24_i32 : i32 to vector<16x32xi32>
    %29 = arith.cmpi slt, %9, %28 : vector<16x32xi32>
    %30 = arith.andi %27, %29 : vector<16x32xi1>
    %31 = arith.extui %30 : vector<16x32xi1> to vector<16x32xi32>
    %32 = arith.sitofp %31 : vector<16x32xi32> to vector<16x32xf32>
    %33 = arith.mulf %2, %32 : vector<16x32xf32>
    %c24_i32_15 = arith.constant 24 : i32
    %34 = vector.broadcast %c24_i32_15 : i32 to vector<16x32xi32>
    %35 = arith.cmpi sge, %9, %34 : vector<16x32xi32>
    %c32_i32 = arith.constant 32 : i32
    %36 = vector.broadcast %c32_i32 : i32 to vector<16x32xi32>
    %37 = arith.cmpi slt, %9, %36 : vector<16x32xi32>
    %38 = arith.andi %35, %37 : vector<16x32xi1>
    %39 = arith.extui %38 : vector<16x32xi1> to vector<16x32xi32>
    %40 = arith.sitofp %39 : vector<16x32xi32> to vector<16x32xf32>
    %41 = arith.mulf %2, %40 : vector<16x32xf32>
    %c0_i32_16 = arith.constant 0 : i32
    %42 = vector.broadcast %c0_i32_16 : i32 to vector<16x32xi32>
    %43 = arith.cmpi sge, %9, %42 : vector<16x32xi32>
    %c8_i32_17 = arith.constant 8 : i32
    %44 = vector.broadcast %c8_i32_17 : i32 to vector<16x32xi32>
    %45 = arith.cmpi slt, %9, %44 : vector<16x32xi32>
    %46 = arith.andi %43, %45 : vector<16x32xi1>
    %47 = arith.extui %46 : vector<16x32xi1> to vector<16x32xi32>
    %48 = arith.sitofp %47 : vector<16x32xi32> to vector<16x32xf32>
    %49 = arith.mulf %8, %48 : vector<16x32xf32>
    %c8_i32_18 = arith.constant 8 : i32
    %50 = vector.broadcast %c8_i32_18 : i32 to vector<16x32xi32>
    %51 = arith.cmpi sge, %9, %50 : vector<16x32xi32>
    %c16_i32_19 = arith.constant 16 : i32
    %52 = vector.broadcast %c16_i32_19 : i32 to vector<16x32xi32>
    %53 = arith.cmpi slt, %9, %52 : vector<16x32xi32>
    %54 = arith.andi %51, %53 : vector<16x32xi1>
    %55 = arith.extui %54 : vector<16x32xi1> to vector<16x32xi32>
    %56 = arith.sitofp %55 : vector<16x32xi32> to vector<16x32xf32>
    %57 = arith.mulf %8, %56 : vector<16x32xf32>
    %c16_i32_20 = arith.constant 16 : i32
    %58 = vector.broadcast %c16_i32_20 : i32 to vector<16x32xi32>
    %59 = arith.cmpi sge, %9, %58 : vector<16x32xi32>
    %c24_i32_21 = arith.constant 24 : i32
    %60 = vector.broadcast %c24_i32_21 : i32 to vector<16x32xi32>
    %61 = arith.cmpi slt, %9, %60 : vector<16x32xi32>
    %62 = arith.andi %59, %61 : vector<16x32xi1>
    %63 = arith.extui %62 : vector<16x32xi1> to vector<16x32xi32>
    %64 = arith.sitofp %63 : vector<16x32xi32> to vector<16x32xf32>
    %65 = arith.mulf %8, %64 : vector<16x32xf32>
    %c24_i32_22 = arith.constant 24 : i32
    %66 = vector.broadcast %c24_i32_22 : i32 to vector<16x32xi32>
    %67 = arith.cmpi sge, %9, %66 : vector<16x32xi32>
    %c32_i32_23 = arith.constant 32 : i32
    %68 = vector.broadcast %c32_i32_23 : i32 to vector<16x32xi32>
    %69 = arith.cmpi slt, %9, %68 : vector<16x32xi32>
    %70 = arith.andi %67, %69 : vector<16x32xi1>
    %71 = arith.extui %70 : vector<16x32xi1> to vector<16x32xi32>
    %72 = arith.sitofp %71 : vector<16x32xi32> to vector<16x32xf32>
    %73 = arith.mulf %8, %72 : vector<16x32xf32>
    %74 = vector.extract_strided_slice %5 {offsets = [0, 0], sizes = [8, 32], strides = [1, 1]} : vector<16x32xf32> to vector<8x32xf32>
    %75 = vector.extract_strided_slice %17 {offsets = [0, 0], sizes = [8, 32], strides = [1, 1]} : vector<16x32xf32> to vector<8x32xf32>
    %76 = vector.extract_strided_slice %49 {offsets = [0, 0], sizes = [8, 32], strides = [1, 1]} : vector<16x32xf32> to vector<8x32xf32>
    %cst_24 = arith.constant dense<0.000000e+00> : vector<8x8xf32>
    %77 = tpu.matmul %75, %74, %cst_24 {dimension_numbers = #tpu.dot_dimension_numbers<[1], [1], [0], [0], [0, 0, 1, 0], [], []>} : vector<8x32xf32>, vector<8x32xf32>, vector<8x8xf32> -> vector<8x8xf32>
    %cst_25 = arith.constant dense<0xFF800000> : vector<8xf32>
    %78 = vector.multi_reduction <maximumf>, %77, %cst_25 [1] : vector<8x8xf32> to vector<8xf32>
    %79 = vector.shape_cast %78 : vector<8xf32> to vector<8x1xf32>
    %80 = vector.broadcast %79 : vector<8x1xf32> to vector<8x8xf32>
    %81 = arith.subf %77, %80 : vector<8x8xf32>
    %82 = math.exp %81 : vector<8x8xf32>
    %cst_26 = arith.constant dense<0.000000e+00> : vector<8xf32>
    %83 = vector.multi_reduction <add>, %82, %cst_26 [1] : vector<8x8xf32> to vector<8xf32>
    %84 = vector.shape_cast %83 : vector<8xf32> to vector<8x1xf32>
    %85 = tpu.reciprocal %84 {approx = true} : vector<8x1xf32> -> vector<8x1xf32>
    %86 = vector.broadcast %85 : vector<8x1xf32> to vector<8x8xf32>
    %87 = arith.mulf %82, %86 : vector<8x8xf32>
    %cst_27 = arith.constant dense<0.000000e+00> : vector<8x32xf32>
    %88 = tpu.matmul %87, %76, %cst_27 {dimension_numbers = #tpu.dot_dimension_numbers<[1], [0], [0], [1], [0, 0, 1, 1], [], []>} : vector<8x8xf32>, vector<8x32xf32>, vector<8x32xf32> -> vector<8x32xf32>
    %89 = vector.extract_strided_slice %25 {offsets = [0, 0], sizes = [8, 32], strides = [1, 1]} : vector<16x32xf32> to vector<8x32xf32>
    %90 = vector.extract_strided_slice %57 {offsets = [0, 0], sizes = [8, 32], strides = [1, 1]} : vector<16x32xf32> to vector<8x32xf32>
    %cst_28 = arith.constant dense<0.000000e+00> : vector<8x8xf32>
    %91 = tpu.matmul %89, %74, %cst_28 {dimension_numbers = #tpu.dot_dimension_numbers<[1], [1], [0], [0], [0, 0, 1, 0], [], []>} : vector<8x32xf32>, vector<8x32xf32>, vector<8x8xf32> -> vector<8x8xf32>
    %cst_29 = arith.constant dense<0xFF800000> : vector<8xf32>
    %92 = vector.multi_reduction <maximumf>, %91, %cst_29 [1] : vector<8x8xf32> to vector<8xf32>
    %93 = vector.shape_cast %92 : vector<8xf32> to vector<8x1xf32>
    %94 = vector.broadcast %93 : vector<8x1xf32> to vector<8x8xf32>
    %95 = arith.subf %91, %94 : vector<8x8xf32>
    %96 = math.exp %95 : vector<8x8xf32>
    %cst_30 = arith.constant dense<0.000000e+00> : vector<8xf32>
    %97 = vector.multi_reduction <add>, %96, %cst_30 [1] : vector<8x8xf32> to vector<8xf32>
    %98 = vector.shape_cast %97 : vector<8xf32> to vector<8x1xf32>
    %99 = tpu.reciprocal %98 {approx = true} : vector<8x1xf32> -> vector<8x1xf32>
    %100 = vector.broadcast %99 : vector<8x1xf32> to vector<8x8xf32>
    %101 = arith.mulf %96, %100 : vector<8x8xf32>
    %cst_31 = arith.constant dense<0.000000e+00> : vector<8x32xf32>
    %102 = tpu.matmul %101, %90, %cst_31 {dimension_numbers = #tpu.dot_dimension_numbers<[1], [0], [0], [1], [0, 0, 1, 1], [], []>} : vector<8x8xf32>, vector<8x32xf32>, vector<8x32xf32> -> vector<8x32xf32>
    %103 = vector.extract_strided_slice %33 {offsets = [0, 0], sizes = [8, 32], strides = [1, 1]} : vector<16x32xf32> to vector<8x32xf32>
    %104 = vector.extract_strided_slice %65 {offsets = [0, 0], sizes = [8, 32], strides = [1, 1]} : vector<16x32xf32> to vector<8x32xf32>
    %cst_32 = arith.constant dense<0.000000e+00> : vector<8x8xf32>
    %105 = tpu.matmul %103, %74, %cst_32 {dimension_numbers = #tpu.dot_dimension_numbers<[1], [1], [0], [0], [0, 0, 1, 0], [], []>} : vector<8x32xf32>, vector<8x32xf32>, vector<8x8xf32> -> vector<8x8xf32>
    %cst_33 = arith.constant dense<0xFF800000> : vector<8xf32>
    %106 = vector.multi_reduction <maximumf>, %105, %cst_33 [1] : vector<8x8xf32> to vector<8xf32>
    %107 = vector.shape_cast %106 : vector<8xf32> to vector<8x1xf32>
    %108 = vector.broadcast %107 : vector<8x1xf32> to vector<8x8xf32>
    %109 = arith.subf %105, %108 : vector<8x8xf32>
    %110 = math.exp %109 : vector<8x8xf32>
    %cst_34 = arith.constant dense<0.000000e+00> : vector<8xf32>
    %111 = vector.multi_reduction <add>, %110, %cst_34 [1] : vector<8x8xf32> to vector<8xf32>
    %112 = vector.shape_cast %111 : vector<8xf32> to vector<8x1xf32>
    %113 = tpu.reciprocal %112 {approx = true} : vector<8x1xf32> -> vector<8x1xf32>
    %114 = vector.broadcast %113 : vector<8x1xf32> to vector<8x8xf32>
    %115 = arith.mulf %110, %114 : vector<8x8xf32>
    %cst_35 = arith.constant dense<0.000000e+00> : vector<8x32xf32>
    %116 = tpu.matmul %115, %104, %cst_35 {dimension_numbers = #tpu.dot_dimension_numbers<[1], [0], [0], [1], [0, 0, 1, 1], [], []>} : vector<8x8xf32>, vector<8x32xf32>, vector<8x32xf32> -> vector<8x32xf32>
    %117 = vector.extract_strided_slice %41 {offsets = [0, 0], sizes = [8, 32], strides = [1, 1]} : vector<16x32xf32> to vector<8x32xf32>
    %118 = vector.extract_strided_slice %73 {offsets = [0, 0], sizes = [8, 32], strides = [1, 1]} : vector<16x32xf32> to vector<8x32xf32>
    %cst_36 = arith.constant dense<0.000000e+00> : vector<8x8xf32>
    %119 = tpu.matmul %117, %74, %cst_36 {dimension_numbers = #tpu.dot_dimension_numbers<[1], [1], [0], [0], [0, 0, 1, 0], [], []>} : vector<8x32xf32>, vector<8x32xf32>, vector<8x8xf32> -> vector<8x8xf32>
    %cst_37 = arith.constant dense<0xFF800000> : vector<8xf32>
    %120 = vector.multi_reduction <maximumf>, %119, %cst_37 [1] : vector<8x8xf32> to vector<8xf32>
    %121 = vector.shape_cast %120 : vector<8xf32> to vector<8x1xf32>
    %122 = vector.broadcast %121 : vector<8x1xf32> to vector<8x8xf32>
    %123 = arith.subf %119, %122 : vector<8x8xf32>
    %124 = math.exp %123 : vector<8x8xf32>
    %cst_38 = arith.constant dense<0.000000e+00> : vector<8xf32>
    %125 = vector.multi_reduction <add>, %124, %cst_38 [1] : vector<8x8xf32> to vector<8xf32>
    %126 = vector.shape_cast %125 : vector<8xf32> to vector<8x1xf32>
    %127 = tpu.reciprocal %126 {approx = true} : vector<8x1xf32> -> vector<8x1xf32>
    %128 = vector.broadcast %127 : vector<8x1xf32> to vector<8x8xf32>
    %129 = arith.mulf %124, %128 : vector<8x8xf32>
    %cst_39 = arith.constant dense<0.000000e+00> : vector<8x32xf32>
    %130 = tpu.matmul %129, %118, %cst_39 {dimension_numbers = #tpu.dot_dimension_numbers<[1], [0], [0], [1], [0, 0, 1, 1], [], []>} : vector<8x8xf32>, vector<8x32xf32>, vector<8x32xf32> -> vector<8x32xf32>
    %131 = vector.extract_strided_slice %5 {offsets = [8, 0], sizes = [8, 32], strides = [1, 1]} : vector<16x32xf32> to vector<8x32xf32>
    %132 = vector.extract_strided_slice %17 {offsets = [8, 0], sizes = [8, 32], strides = [1, 1]} : vector<16x32xf32> to vector<8x32xf32>
    %133 = vector.extract_strided_slice %49 {offsets = [8, 0], sizes = [8, 32], strides = [1, 1]} : vector<16x32xf32> to vector<8x32xf32>
    %cst_40 = arith.constant dense<0.000000e+00> : vector<8x8xf32>
    %134 = tpu.matmul %132, %131, %cst_40 {dimension_numbers = #tpu.dot_dimension_numbers<[1], [1], [0], [0], [0, 0, 1, 0], [], []>} : vector<8x32xf32>, vector<8x32xf32>, vector<8x8xf32> -> vector<8x8xf32>
    %cst_41 = arith.constant dense<0xFF800000> : vector<8xf32>
    %135 = vector.multi_reduction <maximumf>, %134, %cst_41 [1] : vector<8x8xf32> to vector<8xf32>
    %136 = vector.shape_cast %135 : vector<8xf32> to vector<8x1xf32>
    %137 = vector.broadcast %136 : vector<8x1xf32> to vector<8x8xf32>
    %138 = arith.subf %134, %137 : vector<8x8xf32>
    %139 = math.exp %138 : vector<8x8xf32>
    %cst_42 = arith.constant dense<0.000000e+00> : vector<8xf32>
    %140 = vector.multi_reduction <add>, %139, %cst_42 [1] : vector<8x8xf32> to vector<8xf32>
    %141 = vector.shape_cast %140 : vector<8xf32> to vector<8x1xf32>
    %142 = tpu.reciprocal %141 {approx = true} : vector<8x1xf32> -> vector<8x1xf32>
    %143 = vector.broadcast %142 : vector<8x1xf32> to vector<8x8xf32>
    %144 = arith.mulf %139, %143 : vector<8x8xf32>
    %cst_43 = arith.constant dense<0.000000e+00> : vector<8x32xf32>
    %145 = tpu.matmul %144, %133, %cst_43 {dimension_numbers = #tpu.dot_dimension_numbers<[1], [0], [0], [1], [0, 0, 1, 1], [], []>} : vector<8x8xf32>, vector<8x32xf32>, vector<8x32xf32> -> vector<8x32xf32>
    %146 = vector.extract_strided_slice %25 {offsets = [8, 0], sizes = [8, 32], strides = [1, 1]} : vector<16x32xf32> to vector<8x32xf32>
    %147 = vector.extract_strided_slice %57 {offsets = [8, 0], sizes = [8, 32], strides = [1, 1]} : vector<16x32xf32> to vector<8x32xf32>
    %cst_44 = arith.constant dense<0.000000e+00> : vector<8x8xf32>
    %148 = tpu.matmul %146, %131, %cst_44 {dimension_numbers = #tpu.dot_dimension_numbers<[1], [1], [0], [0], [0, 0, 1, 0], [], []>} : vector<8x32xf32>, vector<8x32xf32>, vector<8x8xf32> -> vector<8x8xf32>
    %cst_45 = arith.constant dense<0xFF800000> : vector<8xf32>
    %149 = vector.multi_reduction <maximumf>, %148, %cst_45 [1] : vector<8x8xf32> to vector<8xf32>
    %150 = vector.shape_cast %149 : vector<8xf32> to vector<8x1xf32>
    %151 = vector.broadcast %150 : vector<8x1xf32> to vector<8x8xf32>
    %152 = arith.subf %148, %151 : vector<8x8xf32>
    %153 = math.exp %152 : vector<8x8xf32>
    %cst_46 = arith.constant dense<0.000000e+00> : vector<8xf32>
    %154 = vector.multi_reduction <add>, %153, %cst_46 [1] : vector<8x8xf32> to vector<8xf32>
    %155 = vector.shape_cast %154 : vector<8xf32> to vector<8x1xf32>
    %156 = tpu.reciprocal %155 {approx = true} : vector<8x1xf32> -> vector<8x1xf32>
    %157 = vector.broadcast %156 : vector<8x1xf32> to vector<8x8xf32>
    %158 = arith.mulf %153, %157 : vector<8x8xf32>
    %cst_47 = arith.constant dense<0.000000e+00> : vector<8x32xf32>
    %159 = tpu.matmul %158, %147, %cst_47 {dimension_numbers = #tpu.dot_dimension_numbers<[1], [0], [0], [1], [0, 0, 1, 1], [], []>} : vector<8x8xf32>, vector<8x32xf32>, vector<8x32xf32> -> vector<8x32xf32>
    %160 = vector.extract_strided_slice %33 {offsets = [8, 0], sizes = [8, 32], strides = [1, 1]} : vector<16x32xf32> to vector<8x32xf32>
    %161 = vector.extract_strided_slice %65 {offsets = [8, 0], sizes = [8, 32], strides = [1, 1]} : vector<16x32xf32> to vector<8x32xf32>
    %cst_48 = arith.constant dense<0.000000e+00> : vector<8x8xf32>
    %162 = tpu.matmul %160, %131, %cst_48 {dimension_numbers = #tpu.dot_dimension_numbers<[1], [1], [0], [0], [0, 0, 1, 0], [], []>} : vector<8x32xf32>, vector<8x32xf32>, vector<8x8xf32> -> vector<8x8xf32>
    %cst_49 = arith.constant dense<0xFF800000> : vector<8xf32>
    %163 = vector.multi_reduction <maximumf>, %162, %cst_49 [1] : vector<8x8xf32> to vector<8xf32>
    %164 = vector.shape_cast %163 : vector<8xf32> to vector<8x1xf32>
    %165 = vector.broadcast %164 : vector<8x1xf32> to vector<8x8xf32>
    %166 = arith.subf %162, %165 : vector<8x8xf32>
    %167 = math.exp %166 : vector<8x8xf32>
    %cst_50 = arith.constant dense<0.000000e+00> : vector<8xf32>
    %168 = vector.multi_reduction <add>, %167, %cst_50 [1] : vector<8x8xf32> to vector<8xf32>
    %169 = vector.shape_cast %168 : vector<8xf32> to vector<8x1xf32>
    %170 = tpu.reciprocal %169 {approx = true} : vector<8x1xf32> -> vector<8x1xf32>
    %171 = vector.broadcast %170 : vector<8x1xf32> to vector<8x8xf32>
    %172 = arith.mulf %167, %171 : vector<8x8xf32>
    %cst_51 = arith.constant dense<0.000000e+00> : vector<8x32xf32>
    %173 = tpu.matmul %172, %161, %cst_51 {dimension_numbers = #tpu.dot_dimension_numbers<[1], [0], [0], [1], [0, 0, 1, 1], [], []>} : vector<8x8xf32>, vector<8x32xf32>, vector<8x32xf32> -> vector<8x32xf32>
    %174 = vector.extract_strided_slice %41 {offsets = [8, 0], sizes = [8, 32], strides = [1, 1]} : vector<16x32xf32> to vector<8x32xf32>
    %175 = vector.extract_strided_slice %73 {offsets = [8, 0], sizes = [8, 32], strides = [1, 1]} : vector<16x32xf32> to vector<8x32xf32>
    %cst_52 = arith.constant dense<0.000000e+00> : vector<8x8xf32>
    %176 = tpu.matmul %174, %131, %cst_52 {dimension_numbers = #tpu.dot_dimension_numbers<[1], [1], [0], [0], [0, 0, 1, 0], [], []>} : vector<8x32xf32>, vector<8x32xf32>, vector<8x8xf32> -> vector<8x8xf32>
    %cst_53 = arith.constant dense<0xFF800000> : vector<8xf32>
    %177 = vector.multi_reduction <maximumf>, %176, %cst_53 [1] : vector<8x8xf32> to vector<8xf32>
    %178 = vector.shape_cast %177 : vector<8xf32> to vector<8x1xf32>
    %179 = vector.broadcast %178 : vector<8x1xf32> to vector<8x8xf32>
    %180 = arith.subf %176, %179 : vector<8x8xf32>
    %181 = math.exp %180 : vector<8x8xf32>
    %cst_54 = arith.constant dense<0.000000e+00> : vector<8xf32>
    %182 = vector.multi_reduction <add>, %181, %cst_54 [1] : vector<8x8xf32> to vector<8xf32>
    %183 = vector.shape_cast %182 : vector<8xf32> to vector<8x1xf32>
    %184 = tpu.reciprocal %183 {approx = true} : vector<8x1xf32> -> vector<8x1xf32>
    %185 = vector.broadcast %184 : vector<8x1xf32> to vector<8x8xf32>
    %186 = arith.mulf %181, %185 : vector<8x8xf32>
    %cst_55 = arith.constant dense<0.000000e+00> : vector<8x32xf32>
    %187 = tpu.matmul %186, %175, %cst_55 {dimension_numbers = #tpu.dot_dimension_numbers<[1], [0], [0], [1], [0, 0, 1, 1], [], []>} : vector<8x8xf32>, vector<8x32xf32>, vector<8x32xf32> -> vector<8x32xf32>
    %188 = tpu.concatenate %88, %102, %116, %130, %145, %159, %173, %187 in 0 : vector<8x32xf32>, vector<8x32xf32>, vector<8x32xf32>, vector<8x32xf32>, vector<8x32xf32>, vector<8x32xf32>, vector<8x32xf32>, vector<8x32xf32> -> vector<64x32xf32>
    %189 = tpu.iota {dimensions = array<i32: 0>} : vector<16x64xi32>
    %190 = tpu.iota {dimensions = array<i32: 1>} : vector<16x64xi32>
    %c4_i32 = arith.constant 4 : i32
    %191 = vector.broadcast %c4_i32 : i32 to vector<16x64xi32>
    %192 = arith.muli %191, %189 : vector<16x64xi32>
    %c0_i32_56 = arith.constant 0 : i32
    %193 = vector.broadcast %c0_i32_56 : i32 to vector<16x64xi32>
    %194 = arith.addi %192, %193 : vector<16x64xi32>
    %195 = arith.cmpi eq, %190, %194 : vector<16x64xi32>
    %196 = arith.extui %195 : vector<16x64xi1> to vector<16x64xi32>
    %197 = arith.sitofp %196 : vector<16x64xi32> to vector<16x64xf32>
    %cst_57 = arith.constant dense<0.000000e+00> : vector<16x32xf32>
    %198 = tpu.matmul %197, %188, %cst_57 {dimension_numbers = #tpu.dot_dimension_numbers<[1], [0], [0], [1], [0, 0, 1, 1], [], []>} : vector<16x64xf32>, vector<64x32xf32>, vector<16x32xf32> -> vector<16x32xf32>
    %c4_i32_58 = arith.constant 4 : i32
    %199 = vector.broadcast %c4_i32_58 : i32 to vector<16x64xi32>
    %200 = arith.muli %199, %189 : vector<16x64xi32>
    %c1_i32 = arith.constant 1 : i32
    %201 = vector.broadcast %c1_i32 : i32 to vector<16x64xi32>
    %202 = arith.addi %200, %201 : vector<16x64xi32>
    %203 = arith.cmpi eq, %190, %202 : vector<16x64xi32>
    %204 = arith.extui %203 : vector<16x64xi1> to vector<16x64xi32>
    %205 = arith.sitofp %204 : vector<16x64xi32> to vector<16x64xf32>
    %cst_59 = arith.constant dense<0.000000e+00> : vector<16x32xf32>
    %206 = tpu.matmul %205, %188, %cst_59 {dimension_numbers = #tpu.dot_dimension_numbers<[1], [0], [0], [1], [0, 0, 1, 1], [], []>} : vector<16x64xf32>, vector<64x32xf32>, vector<16x32xf32> -> vector<16x32xf32>
    %c4_i32_60 = arith.constant 4 : i32
    %207 = vector.broadcast %c4_i32_60 : i32 to vector<16x64xi32>
    %208 = arith.muli %207, %189 : vector<16x64xi32>
    %c2_i32 = arith.constant 2 : i32
    %209 = vector.broadcast %c2_i32 : i32 to vector<16x64xi32>
    %210 = arith.addi %208, %209 : vector<16x64xi32>
    %211 = arith.cmpi eq, %190, %210 : vector<16x64xi32>
    %212 = arith.extui %211 : vector<16x64xi1> to vector<16x64xi32>
    %213 = arith.sitofp %212 : vector<16x64xi32> to vector<16x64xf32>
    %cst_61 = arith.constant dense<0.000000e+00> : vector<16x32xf32>
    %214 = tpu.matmul %213, %188, %cst_61 {dimension_numbers = #tpu.dot_dimension_numbers<[1], [0], [0], [1], [0, 0, 1, 1], [], []>} : vector<16x64xf32>, vector<64x32xf32>, vector<16x32xf32> -> vector<16x32xf32>
    %c4_i32_62 = arith.constant 4 : i32
    %215 = vector.broadcast %c4_i32_62 : i32 to vector<16x64xi32>
    %216 = arith.muli %215, %189 : vector<16x64xi32>
    %c3_i32 = arith.constant 3 : i32
    %217 = vector.broadcast %c3_i32 : i32 to vector<16x64xi32>
    %218 = arith.addi %216, %217 : vector<16x64xi32>
    %219 = arith.cmpi eq, %190, %218 : vector<16x64xi32>
    %220 = arith.extui %219 : vector<16x64xi1> to vector<16x64xi32>
    %221 = arith.sitofp %220 : vector<16x64xi32> to vector<16x64xf32>
    %cst_63 = arith.constant dense<0.000000e+00> : vector<16x32xf32>
    %222 = tpu.matmul %221, %188, %cst_63 {dimension_numbers = #tpu.dot_dimension_numbers<[1], [0], [0], [1], [0, 0, 1, 1], [], []>} : vector<16x64xf32>, vector<64x32xf32>, vector<16x32xf32> -> vector<16x32xf32>
    %223 = tpu.concatenate %198, %206, %214, %222 in 1 : vector<16x32xf32>, vector<16x32xf32>, vector<16x32xf32>, vector<16x32xf32> -> vector<16x128xf32>
    %c0_64 = arith.constant 0 : index
    %c0_65 = arith.constant 0 : index
    %224 = vector.load %arg7[%c0_64, %c0_65] : memref<128x32xf32, #tpu.memory_space<vmem>>, vector<128x32xf32>
    %cst_66 = arith.constant dense<0.000000e+00> : vector<16x32xf32>
    %225 = tpu.matmul %223, %224, %cst_66 {dimension_numbers = #tpu.dot_dimension_numbers<[1], [0], [0], [1], [0, 0, 1, 1], [], []>} : vector<16x128xf32>, vector<128x32xf32>, vector<16x32xf32> -> vector<16x32xf32>
    %c0_67 = arith.constant 0 : index
    %c0_68 = arith.constant 0 : index
    %226 = vector.load %arg8[%c0_67, %c0_68] : memref<16x32xf32, #tpu.memory_space<vmem>>, vector<16x32xf32>
    tpu.vector_store %arg8[%c0_67, %c0_68], %225 {strides = array<i32>} : memref<16x32xf32, #tpu.memory_space<vmem>>, vector<16x32xf32>,
    return
  }
  func.func @transform_0(%arg0: i32) -> (i32, i32) {
    %c0_i32 = arith.constant 0 : i32
    %c0_i32_0 = arith.constant 0 : i32
    %c0_i32_1 = arith.constant 0 : i32
    return %c0_i32, %c0_i32_0 : i32, i32
  }
  func.func @transform_1(%arg0: i32) -> (i32, i32) {
    %c0_i32 = arith.constant 0 : i32
    %c0_i32_0 = arith.constant 0 : i32
    %c0_i32_1 = arith.constant 0 : i32
    return %c0_i32, %c0_i32_0 : i32, i32
  }
  func.func @transform_2(%arg0: i32) -> (i32, i32) {
    %c0_i32 = arith.constant 0 : i32
    %c0_i32_0 = arith.constant 0 : i32
    %c0_i32_1 = arith.constant 0 : i32
    return %c0_i32, %c0_i32_0 : i32, i32
  }
  func.func @transform_3(%arg0: i32) -> (i32, i32) {
    %c0_i32 = arith.constant 0 : i32
    %c0_i32_0 = arith.constant 0 : i32
    %c0_i32_1 = arith.constant 0 : i32
    return %c0_i32, %c0_i32_0 : i32, i32
  }
  func.func @transform_4(%arg0: i32) -> (i32, i32) {
    %c0_i32 = arith.constant 0 : i32
    %c0_i32_0 = arith.constant 0 : i32
    %c0_i32_1 = arith.constant 0 : i32
    return %c0_i32, %c0_i32_0 : i32, i32
  }
  func.func @transform_5(%arg0: i32) -> (i32, i32) {
    %c0_i32 = arith.constant 0 : i32
    %c0_i32_0 = arith.constant 0 : i32
    %c0_i32_1 = arith.constant 0 : i32
    return %c0_i32, %c0_i32_0 : i32, i32
  }
  func.func @transform_6(%arg0: i32) -> (i32, i32) {
    %c0_i32 = arith.constant 0 : i32
    %c0_i32_0 = arith.constant 0 : i32
    %c0_i32_1 = arith.constant 0 : i32
    return %c0_i32, %c0_i32_0 : i32, i32
  }
  func.func @transform_7(%arg0: i32) -> (i32, i32) {
    %c0_i32 = arith.constant 0 : i32
    %c0_i32_0 = arith.constant 0 : i32
    %c0_i32_1 = arith.constant 0 : i32
    return %c0_i32, %c0_i32_0 : i32, i32
  }
}

</mosaic_0001>

<llo_original>
// kernel: multi_head_attention.1
$region0: #{multi_head_attention.1}
  #allocation0 [shape = 'u32[]', space=smem, size = 0x4, offset = 0x4, fixed_abs, tag = 'smem constant byte address 0x4 - core index']
  #allocation1 [shape = 'u32[144,128]{1,0:T(1,128)}', space=vmem, size = 0x12000, scoped, tag = 'internal scratch']
  %s0 = inlined_call_operand.vmem [shape: f32[16,32], index: 0, kind: input, shape index: {}]
  %s1 = inlined_call_operand.vmem [shape: f32[16,32], index: 1, kind: input, shape index: {}]
  %s2 = inlined_call_operand.vmem [shape: f32[16,32], index: 2, kind: input, shape index: {}]
  %s3 = inlined_call_operand.vmem [shape: f32[32,32], index: 3, kind: input, shape index: {}]
  %s4 = inlined_call_operand.vmem [shape: f32[32,32], index: 4, kind: input, shape index: {}]
  %s5 = inlined_call_operand.vmem [shape: f32[32,32], index: 5, kind: input, shape index: {}]
  %s6 = inlined_call_operand.vmem [shape: f32[128,32], index: 6, kind: input, shape index: {}]
  %s7 = inlined_call_operand.hbm [shape: f32[16,32], index: 7, kind: output, shape index: {}]
  %s8 = sld [smem:[#allocation0]]
  $region38: #{multi_head_attention.1} parent=0
    _
  %s10 = ssub.s32 1, %s8
  %s11 = scalar_select 0, %s10, %s8
  $region1: #{multi_head_attention.1} parent=0
    #allocation2 [shape = 'u8[8192]{0}', space=vmem, size = 0x2000, scoped, tag = 'output window, operand 0, single buffered']
    #allocation3 [shape = 's32[1]{0}', space=sflag, size = 0x4, scoped, tag = 'scoped memory for multi_head_attention.1']
    %12 = vsyncpa [#allocation3], 0
    // Predicated region
    $region2: #{multi_head_attention.1} parent=1 // pred_check
      _
    $region3: #{multi_head_attention.1} parent=1 // pred_check_branch
      %14 = sbr.rel (0) target = $region5
    $region4: #{multi_head_attention.1} parent=1 // pred_region
      _
    $region5: #{multi_head_attention.1} parent=1 // pred_fallthru
      _
    // Predicated region
    $region6: #{multi_head_attention.1} parent=1 // pred_check
      _
    $region7: #{multi_head_attention.1} parent=1 // pred_check_branch
      %16 = sbr.rel (0) target = $region9
    $region8: #{multi_head_attention.1} parent=1 // pred_region
      _
    $region9: #{multi_head_attention.1} parent=1 // pred_fallthru
      _
    // Predicated region
    $region10: #{multi_head_attention.1} parent=1 // pred_check
      _
    $region11: #{multi_head_attention.1} parent=1 // pred_check_branch
      %18 = sbr.rel (0) target = $region13
    $region12: #{multi_head_attention.1} parent=1 // pred_region
      _
    $region13: #{multi_head_attention.1} parent=1 // pred_fallthru
      _
    // Predicated region
    $region14: #{multi_head_attention.1} parent=1 // pred_check
      _
    $region15: #{multi_head_attention.1} parent=1 // pred_check_branch
      %20 = sbr.rel (0) target = $region17
    $region16: #{multi_head_attention.1} parent=1 // pred_region
      _
    $region17: #{multi_head_attention.1} parent=1 // pred_fallthru
      _
    // Predicated region
    $region18: #{multi_head_attention.1} parent=1 // pred_check
      _
    $region19: #{multi_head_attention.1} parent=1 // pred_check_branch
      %22 = sbr.rel (0) target = $region21
    $region20: #{multi_head_attention.1} parent=1 // pred_region
      _
    $region21: #{multi_head_attention.1} parent=1 // pred_fallthru
      _
    // Predicated region
    $region22: #{multi_head_attention.1} parent=1 // pred_check
      _
    $region23: #{multi_head_attention.1} parent=1 // pred_check_branch
      %24 = sbr.rel (0) target = $region25
    $region24: #{multi_head_attention.1} parent=1 // pred_region
      _
    $region25: #{multi_head_attention.1} parent=1 // pred_fallthru
      _
    // Predicated region
    $region26: #{multi_head_attention.1} parent=1 // pred_check
      _
    $region27: #{multi_head_attention.1} parent=1 // pred_check_branch
      %26 = sbr.rel (0) target = $region29
    $region28: #{multi_head_attention.1} parent=1 // pred_region
      _
    $region29: #{multi_head_attention.1} parent=1 // pred_fallthru
      _
    %v27 = vld [vmem:[%s0] sm:$0xff]
    %v28 = vld [vmem:[%s0 + $0x8] sm:$0xff]
    %v29 = vld [vmem:[%s3] sm:$0xff]
    %v30 = vld [vmem:[%s3 + $0x8] sm:$0xff]
    %v31 = vld [vmem:[%s3 + $0x10] sm:$0xff]
    %v32 = vld [vmem:[%s3 + $0x18] sm:$0xff]
    %vm33 = vcmask 261120
    %v35 = vsel %vm33, %v27, 0
    %v38 = vsel %vm33, %v28, 0
    %40 = vmatprep.subr.mxu0 0.0
    %41 = vmatpush1.msra.mxu0 %v29
    %42 = vmatprep.subr.mxu0 0.0
    %43 = vmatpush1.msra.mxu0 %v30
    %44 = vmatprep.subr.mxu0 0.0
    %45 = vmatpush1.msra.mxu0 %v31
    %46 = vmatprep.subr.mxu0 0.0
    %47 = vmatpush1.msra.mxu0 %v32
    %48 = vmatprep.subr.mxu0 0.0
    %49 = vmatpush1.msra.mxu0 0.0
    %50 = vmatprep.subr.mxu0 0.0
    %51 = vmatpush1.msra.mxu0 0.0
    %52 = vmatprep.subr.mxu0 0.0
    %53 = vmatpush1.msra.mxu0 0.0
    %54 = vmatprep.subr.mxu0 0.0
    %55 = vmatpush1.msra.mxu0 0.0
    %56 = vmatprep.subr.mxu0 0.0
    %57 = vmatpush1.msra.mxu0 0.0
    %58 = vmatprep.subr.mxu0 0.0
    %59 = vmatpush1.msra.mxu0 0.0
    %60 = vmatprep.subr.mxu0 0.0
    %61 = vmatpush1.msra.mxu0 0.0
    %62 = vmatprep.subr.mxu0 0.0
    %63 = vmatpush1.msra.mxu0 0.0
    %64 = vmatprep.subr.mxu0 0.0
    %65 = vmatpush1.msra.mxu0 0.0
    %66 = vmatprep.subr.mxu0 0.0
    %67 = vmatpush1.msra.mxu0 0.0
    %68 = vmatprep.subr.mxu0 0.0
    %69 = vmatpush1.msra.mxu0 0.0
    %70 = vmatprep.subr.mxu0 0.0
    %71 = vmatpush1.msra.mxu0 0.0
    %72 = vmatprep.subr.mxu0 0.0
    %73 = vmatpush1.msra.mxu0 0.0
    %74 = vmatprep.subr.mxu0 0.0
    %75 = vmatpush1.msra.mxu0 0.0
    %76 = vmatprep.subr.mxu0 0.0
    %77 = vmatpush1.msra.mxu0 0.0
    %78 = vmatprep.subr.mxu0 0.0
    %79 = vmatpush1.msra.mxu0 0.0
    %80 = vmatprep.subr.mxu0 0.0
    %81 = vmatpush1.msra.mxu0 0.0
    %82 = vmatprep.subr.mxu0 0.0
    %83 = vmatpush1.msra.mxu0 0.0
    %84 = vmatprep.subr.mxu0 0.0
    %85 = vmatpush1.msra.mxu0 0.0
    %86 = vmatprep.subr.mxu0 0.0
    %87 = vmatpush1.msra.mxu0 0.0
    %88 = vmatprep.subr.mxu0 0.0
    %89 = vmatpush1.msra.mxu0 0.0
    %90 = vmatprep.subr.mxu0 0.0
    %91 = vmatpush1.msra.mxu0 0.0
    %92 = vmatprep.subr.mxu0 0.0
    %93 = vmatpush1.msra.mxu0 0.0
    %94 = vmatprep.subr.mxu0 0.0
    %95 = vmatpush1.msra.mxu0 0.0
    %96 = vmatprep.subr.mxu0 0.0
    %97 = vmatpush1.msra.mxu0 0.0
    %98 = vmatprep.subr.mxu0 0.0
    %99 = vmatpush1.msra.mxu0 0.0
    %100 = vmatprep.subr.mxu0 0.0
    %101 = vmatpush1.msra.mxu0 0.0
    %102 = vmatprep.subr.mxu0 0.0
    %103 = vmatpush1.msra.mxu0 0.0
    %104 = vmatprep.mubr.f32.mxu0 0.0
    %105 = vmatmul.mubr.f32.gmra.mrb[0].mxu0 %v35
    %v106 = vpop.f32.mrb[0].mxu0
    %v107 = vadd.f32 0.0, %v106
    %v108 = vpop.f32.mrb[0].mxu0
    %109 = vmatprep.mubr.f32.mxu0 0.0
    %110 = vmatmul.mubr.f32.gmra.mrb[0].mxu0 %v38
    %v111 = vpop.f32.mrb[0].mxu0
    %v112 = vadd.f32 0.0, %v111
    %v113 = vpop.f32.mrb[0].mxu0
    %114 = vdwg.mxu0
    %v115 = vld [vmem:[%s1] sm:$0xff]
    %v116 = vld [vmem:[%s1 + $0x8] sm:$0xff]
    %v117 = vld [vmem:[%s4] sm:$0xff]
    %v118 = vld [vmem:[%s4 + $0x8] sm:$0xff]
    %v119 = vld [vmem:[%s4 + $0x10] sm:$0xff]
    %v120 = vld [vmem:[%s4 + $0x18] sm:$0xff]
    %v122 = vsel %vm33, %v115, 0
    %v125 = vsel %vm33, %v116, 0
    %127 = vmatprep.subr.mxu0 0.0
    %128 = vmatpush1.msra.mxu0 %v117
    %129 = vmatprep.subr.mxu0 0.0
    %130 = vmatpush1.msra.mxu0 %v118
    %131 = vmatprep.subr.mxu0 0.0
    %132 = vmatpush1.msra.mxu0 %v119
    %133 = vmatprep.subr.mxu0 0.0
    %134 = vmatpush1.msra.mxu0 %v120
    %135 = vmatprep.subr.mxu0 0.0
    %136 = vmatpush1.msra.mxu0 0.0
    %137 = vmatprep.subr.mxu0 0.0
    %138 = vmatpush1.msra.mxu0 0.0
    %139 = vmatprep.subr.mxu0 0.0
    %140 = vmatpush1.msra.mxu0 0.0
    %141 = vmatprep.subr.mxu0 0.0
    %142 = vmatpush1.msra.mxu0 0.0
    %143 = vmatprep.subr.mxu0 0.0
    %144 = vmatpush1.msra.mxu0 0.0
    %145 = vmatprep.subr.mxu0 0.0
    %146 = vmatpush1.msra.mxu0 0.0
    %147 = vmatprep.subr.mxu0 0.0
    %148 = vmatpush1.msra.mxu0 0.0
    %149 = vmatprep.subr.mxu0 0.0
    %150 = vmatpush1.msra.mxu0 0.0
    %151 = vmatprep.subr.mxu0 0.0
    %152 = vmatpush1.msra.mxu0 0.0
    %153 = vmatprep.subr.mxu0 0.0
    %154 = vmatpush1.msra.mxu0 0.0
    %155 = vmatprep.subr.mxu0 0.0
    %156 = vmatpush1.msra.mxu0 0.0
    %157 = vmatprep.subr.mxu0 0.0
    %158 = vmatpush1.msra.mxu0 0.0
    %159 = vmatprep.subr.mxu0 0.0
    %160 = vmatpush1.msra.mxu0 0.0
    %161 = vmatprep.subr.mxu0 0.0
    %162 = vmatpush1.msra.mxu0 0.0
    %163 = vmatprep.subr.mxu0 0.0
    %164 = vmatpush1.msra.mxu0 0.0
    %165 = vmatprep.subr.mxu0 0.0
    %166 = vmatpush1.msra.mxu0 0.0
    %167 = vmatprep.subr.mxu0 0.0
    %168 = vmatpush1.msra.mxu0 0.0
    %169 = vmatprep.subr.mxu0 0.0
    %170 = vmatpush1.msra.mxu0 0.0
    %171 = vmatprep.subr.mxu0 0.0
    %172 = vmatpush1.msra.mxu0 0.0
    %173 = vmatprep.subr.mxu0 0.0
    %174 = vmatpush1.msra.mxu0 0.0
    %175 = vmatprep.subr.mxu0 0.0
    %176 = vmatpush1.msra.mxu0 0.0
    %177 = vmatprep.subr.mxu0 0.0
    %178 = vmatpush1.msra.mxu0 0.0
    %179 = vmatprep.subr.mxu0 0.0
    %180 = vmatpush1.msra.mxu0 0.0
    %181 = vmatprep.subr.mxu0 0.0
    %182 = vmatpush1.msra.mxu0 0.0
    %183 = vmatprep.subr.mxu0 0.0
    %184 = vmatpush1.msra.mxu0 0.0
    %185 = vmatprep.subr.mxu0 0.0
    %186 = vmatpush1.msra.mxu0 0.0
    %187 = vmatprep.subr.mxu0 0.0
    %188 = vmatpush1.msra.mxu0 0.0
    %189 = vmatprep.subr.mxu0 0.0
    %190 = vmatpush1.msra.mxu0 0.0
    %191 = vmatprep.mubr.f32.mxu0 0.0
    %192 = vmatmul.mubr.f32.gmra.mrb[0].mxu0 %v122
    %v193 = vpop.f32.mrb[0].mxu0
    %v194 = vadd.f32 0.0, %v193
    %v195 = vpop.f32.mrb[0].mxu0
    %196 = vmatprep.mubr.f32.mxu0 0.0
    %197 = vmatmul.mubr.f32.gmra.mrb[0].mxu0 %v125
    %v198 = vpop.f32.mrb[0].mxu0
    %v199 = vadd.f32 0.0, %v198
    %v200 = vpop.f32.mrb[0].mxu0
    %201 = vdwg.mxu0
    %v202 = vld [vmem:[%s2] sm:$0xff]
    %v203 = vld [vmem:[%s2 + $0x8] sm:$0xff]
    %v204 = vld [vmem:[%s5] sm:$0xff]
    %v205 = vld [vmem:[%s5 + $0x8] sm:$0xff]
    %v206 = vld [vmem:[%s5 + $0x10] sm:$0xff]
    %v207 = vld [vmem:[%s5 + $0x18] sm:$0xff]
    %v209 = vsel %vm33, %v202, 0
    %v212 = vsel %vm33, %v203, 0
    %214 = vmatprep.subr.mxu0 0.0
    %215 = vmatpush1.msra.mxu0 %v204
    %216 = vmatprep.subr.mxu0 0.0
    %217 = vmatpush1.msra.mxu0 %v205
    %218 = vmatprep.subr.mxu0 0.0
    %219 = vmatpush1.msra.mxu0 %v206
    %220 = vmatprep.subr.mxu0 0.0
    %221 = vmatpush1.msra.mxu0 %v207
    %222 = vmatprep.subr.mxu0 0.0
    %223 = vmatpush1.msra.mxu0 0.0
    %224 = vmatprep.subr.mxu0 0.0
    %225 = vmatpush1.msra.mxu0 0.0
    %226 = vmatprep.subr.mxu0 0.0
    %227 = vmatpush1.msra.mxu0 0.0
    %228 = vmatprep.subr.mxu0 0.0
    %229 = vmatpush1.msra.mxu0 0.0
    %230 = vmatprep.subr.mxu0 0.0
    %231 = vmatpush1.msra.mxu0 0.0
    %232 = vmatprep.subr.mxu0 0.0
    %233 = vmatpush1.msra.mxu0 0.0
    %234 = vmatprep.subr.mxu0 0.0
    %235 = vmatpush1.msra.mxu0 0.0
    %236 = vmatprep.subr.mxu0 0.0
    %237 = vmatpush1.msra.mxu0 0.0
    %238 = vmatprep.subr.mxu0 0.0
    %239 = vmatpush1.msra.mxu0 0.0
    %240 = vmatprep.subr.mxu0 0.0
    %241 = vmatpush1.msra.mxu0 0.0
    %242 = vmatprep.subr.mxu0 0.0
    %243 = vmatpush1.msra.mxu0 0.0
    %244 = vmatprep.subr.mxu0 0.0
    %245 = vmatpush1.msra.mxu0 0.0
    %246 = vmatprep.subr.mxu0 0.0
    %247 = vmatpush1.msra.mxu0 0.0
    %248 = vmatprep.subr.mxu0 0.0
    %249 = vmatpush1.msra.mxu0 0.0
    %250 = vmatprep.subr.mxu0 0.0
    %251 = vmatpush1.msra.mxu0 0.0
    %252 = vmatprep.subr.mxu0 0.0
    %253 = vmatpush1.msra.mxu0 0.0
    %254 = vmatprep.subr.mxu0 0.0
    %255 = vmatpush1.msra.mxu0 0.0
    %256 = vmatprep.subr.mxu0 0.0
    %257 = vmatpush1.msra.mxu0 0.0
    %258 = vmatprep.subr.mxu0 0.0
    %259 = vmatpush1.msra.mxu0 0.0
    %260 = vmatprep.subr.mxu0 0.0
    %261 = vmatpush1.msra.mxu0 0.0
    %262 = vmatprep.subr.mxu0 0.0
    %263 = vmatpush1.msra.mxu0 0.0
    %264 = vmatprep.subr.mxu0 0.0
    %265 = vmatpush1.msra.mxu0 0.0
    %266 = vmatprep.subr.mxu0 0.0
    %267 = vmatpush1.msra.mxu0 0.0
    %268 = vmatprep.subr.mxu0 0.0
    %269 = vmatpush1.msra.mxu0 0.0
    %270 = vmatprep.subr.mxu0 0.0
    %271 = vmatpush1.msra.mxu0 0.0
    %272 = vmatprep.subr.mxu0 0.0
    %273 = vmatpush1.msra.mxu0 0.0
    %274 = vmatprep.subr.mxu0 0.0
    %275 = vmatpush1.msra.mxu0 0.0
    %276 = vmatprep.subr.mxu0 0.0
    %277 = vmatpush1.msra.mxu0 0.0
    %278 = vmatprep.mubr.f32.mxu0 0.0
    %279 = vmatmul.mubr.f32.gmra.mrb[0].mxu0 %v209
    %v280 = vpop.f32.mrb[0].mxu0
    %v281 = vadd.f32 0.0, %v280
    %v282 = vpop.f32.mrb[0].mxu0
    %283 = vmatprep.mubr.f32.mxu0 0.0
    %284 = vmatmul.mubr.f32.gmra.mrb[0].mxu0 %v212
    %v285 = vpop.f32.mrb[0].mxu0
    %v286 = vadd.f32 0.0, %v285
    %v287 = vpop.f32.mrb[0].mxu0
    %288 = vdwg.mxu0
    %v289 = vlaneseq
    %v290 = vand.u32 %v289, 127
    %vm291 = vcmp.ge.s32.totalorder %v290, 0
    %vm292 = vcmp.lt.s32.totalorder %v290, 8
    %vm293 = vmand %vm291, %vm292
    %v294 = vsel %vm293, 1, 0
    %v295 = vcvt.s32.f32 %v294
    %v296 = vmul.f32 %v107, %v295
    %v297 = vmul.f32 %v112, %v295
    %vm298 = vcmp.ge.s32.totalorder %v290, 8
    %vm299 = vcmp.lt.s32.totalorder %v290, 16
    %vm300 = vmand %vm298, %vm299
    %v301 = vsel %vm300, 1, 0
    %v302 = vcvt.s32.f32 %v301
    %v303 = vmul.f32 %v107, %v302
    %v304 = vmul.f32 %v112, %v302
    %vm305 = vcmp.ge.s32.totalorder %v290, 16
    %vm306 = vcmp.lt.s32.totalorder %v290, 24
    %vm307 = vmand %vm305, %vm306
    %v308 = vsel %vm307, 1, 0
    %v309 = vcvt.s32.f32 %v308
    %v310 = vmul.f32 %v107, %v309
    %v311 = vmul.f32 %v112, %v309
    %vm312 = vcmp.ge.s32.totalorder %v290, 24
    %vm313 = vcmp.lt.s32.totalorder %v290, 32
    %vm314 = vmand %vm312, %vm313
    %v315 = vsel %vm314, 1, 0
    %v316 = vcvt.s32.f32 %v315
    %v317 = vmul.f32 %v107, %v316
    %v318 = vmul.f32 %v112, %v316
    %v319 = vmul.f32 %v281, %v295
    %v320 = vmul.f32 %v286, %v295
    %v321 = vmul.f32 %v281, %v302
    %v322 = vmul.f32 %v286, %v302
    %v323 = vmul.f32 %v281, %v309
    %v324 = vmul.f32 %v286, %v309
    %v325 = vmul.f32 %v281, %v316
    %v326 = vmul.f32 %v286, %v316
    %v328 = vsel %vm33, %v296, 0
    %v331 = vsel %vm33, %v194, 0
    %333 = vmatprep.subr.mxu0 0.0
    %334 = vmatpush1.xpose.msra.mxu0 %v331
    %335 = vmatprep.subr.mxu0 0.0
    %336 = vmatpush1.xpose.msra.mxu0 0.0
    %337 = vmatprep.subr.mxu0 0.0
    %338 = vmatpush1.xpose.msra.mxu0 0.0
    %339 = vmatprep.subr.mxu0 0.0
    %340 = vmatpush1.xpose.msra.mxu0 0.0
    %341 = vmatprep.subr.mxu0 0.0
    %342 = vmatpush1.xpose.msra.mxu0 0.0
    %343 = vmatprep.subr.mxu0 0.0
    %344 = vmatpush1.xpose.msra.mxu0 0.0
    %345 = vmatprep.subr.mxu0 0.0
    %346 = vmatpush1.xpose.msra.mxu0 0.0
    %347 = vmatprep.subr.mxu0 0.0
    %348 = vmatpush1.xpose.msra.mxu0 0.0
    %349 = vmatprep.subr.mxu0 0.0
    %350 = vmatpush1.xpose.msra.mxu0 0.0
    %351 = vmatprep.subr.mxu0 0.0
    %352 = vmatpush1.xpose.msra.mxu0 0.0
    %353 = vmatprep.subr.mxu0 0.0
    %354 = vmatpush1.xpose.msra.mxu0 0.0
    %355 = vmatprep.subr.mxu0 0.0
    %356 = vmatpush1.xpose.msra.mxu0 0.0
    %357 = vmatprep.subr.mxu0 0.0
    %358 = vmatpush1.xpose.msra.mxu0 0.0
    %359 = vmatprep.subr.mxu0 0.0
    %360 = vmatpush1.xpose.msra.mxu0 0.0
    %361 = vmatprep.subr.mxu0 0.0
    %362 = vmatpush1.xpose.msra.mxu0 0.0
    %363 = vmatprep.subr.mxu0 0.0
    %364 = vmatpush1.xpose.msra.mxu0 0.0
    %365 = vmatprep.subr.mxu0 0.0
    %366 = vmatpush1.xpose.msra.mxu0 0.0
    %367 = vmatprep.subr.mxu0 0.0
    %368 = vmatpush1.xpose.msra.mxu0 0.0
    %369 = vmatprep.subr.mxu0 0.0
    %370 = vmatpush1.xpose.msra.mxu0 0.0
    %371 = vmatprep.subr.mxu0 0.0
    %372 = vmatpush1.xpose.msra.mxu0 0.0
    %373 = vmatprep.subr.mxu0 0.0
    %374 = vmatpush1.xpose.msra.mxu0 0.0
    %375 = vmatprep.subr.mxu0 0.0
    %376 = vmatpush1.xpose.msra.mxu0 0.0
    %377 = vmatprep.subr.mxu0 0.0
    %378 = vmatpush1.xpose.msra.mxu0 0.0
    %379 = vmatprep.subr.mxu0 0.0
    %380 = vmatpush1.xpose.msra.mxu0 0.0
    %381 = vmatprep.subr.mxu0 0.0
    %382 = vmatpush1.xpose.msra.mxu0 0.0
    %383 = vmatprep.subr.mxu0 0.0
    %384 = vmatpush1.xpose.msra.mxu0 0.0
    %385 = vmatprep.subr.mxu0 0.0
    %386 = vmatpush1.xpose.msra.mxu0 0.0
    %387 = vmatprep.subr.mxu0 0.0
    %388 = vmatpush1.xpose.msra.mxu0 0.0
    %389 = vmatprep.subr.mxu0 0.0
    %390 = vmatpush1.xpose.msra.mxu0 0.0
    %391 = vmatprep.subr.mxu0 0.0
    %392 = vmatpush1.xpose.msra.mxu0 0.0
    %393 = vmatprep.subr.mxu0 0.0
    %394 = vmatpush1.xpose.msra.mxu0 0.0
    %395 = vmatprep.subr.mxu0 0.0
    %396 = vmatpush1.xpose.msra.mxu0 0.0
    %397 = vmatprep.mubr.f32.mxu0 0.0
    %398 = vmatmul.mubr.f32.gmra.mrb[0].mxu0 %v328
    %v399 = vpop.f32.mrb[0].mxu0
    %v400 = vadd.f32 0.0, %v399
    %v401 = vpop.f32.mrb[0].mxu0
    %402 = vdwg.mxu0
    %vm403 = vcmask 64512
    %v404 = vsel %vm403, %v400, -inf
    %405 = vmax.xlane.f32.xlu0 %v404
    %v406 = vpop.xlane.xlu0 %405
    %v407 = vsub.f32 %v400, %v406
    %v408 = vmul.f32 %v407, 1.442695
    %v409 = vpow.pop %v408
    %v410 = vsel %vm403, %v409, 0.0
    %411 = vadd.xlane.f32.xlu0 %v410
    %v412 = vpop.xlane.xlu0 %411
    %v413 = vrcp.pop %v412
    %v414 = vmul.f32 %v409, %v413
    %v416 = vsel %vm403, %v414, 0
    %418 = vmatprep.subr.mxu0 0.0
    %419 = vmatpush1.msra.mxu0 %v319
    %420 = vmatprep.subr.mxu0 0.0
    %421 = vmatpush1.msra.mxu0 0.0
    %422 = vmatprep.subr.mxu0 0.0
    %423 = vmatpush1.msra.mxu0 0.0
    %424 = vmatprep.subr.mxu0 0.0
    %425 = vmatpush1.msra.mxu0 0.0
    %426 = vmatprep.subr.mxu0 0.0
    %427 = vmatpush1.msra.mxu0 0.0
    %428 = vmatprep.subr.mxu0 0.0
    %429 = vmatpush1.msra.mxu0 0.0
    %430 = vmatprep.subr.mxu0 0.0
    %431 = vmatpush1.msra.mxu0 0.0
    %432 = vmatprep.subr.mxu0 0.0
    %433 = vmatpush1.msra.mxu0 0.0
    %434 = vmatprep.subr.mxu0 0.0
    %435 = vmatpush1.msra.mxu0 0.0
    %436 = vmatprep.subr.mxu0 0.0
    %437 = vmatpush1.msra.mxu0 0.0
    %438 = vmatprep.subr.mxu0 0.0
    %439 = vmatpush1.msra.mxu0 0.0
    %440 = vmatprep.subr.mxu0 0.0
    %441 = vmatpush1.msra.mxu0 0.0
    %442 = vmatprep.subr.mxu0 0.0
    %443 = vmatpush1.msra.mxu0 0.0
    %444 = vmatprep.subr.mxu0 0.0
    %445 = vmatpush1.msra.mxu0 0.0
    %446 = vmatprep.subr.mxu0 0.0
    %447 = vmatpush1.msra.mxu0 0.0
    %448 = vmatprep.subr.mxu0 0.0
    %449 = vmatpush1.msra.mxu0 0.0
    %450 = vmatprep.subr.mxu0 0.0
    %451 = vmatpush1.msra.mxu0 0.0
    %452 = vmatprep.subr.mxu0 0.0
    %453 = vmatpush1.msra.mxu0 0.0
    %454 = vmatprep.subr.mxu0 0.0
    %455 = vmatpush1.msra.mxu0 0.0
    %456 = vmatprep.subr.mxu0 0.0
    %457 = vmatpush1.msra.mxu0 0.0
    %458 = vmatprep.subr.mxu0 0.0
    %459 = vmatpush1.msra.mxu0 0.0
    %460 = vmatprep.subr.mxu0 0.0
    %461 = vmatpush1.msra.mxu0 0.0
    %462 = vmatprep.subr.mxu0 0.0
    %463 = vmatpush1.msra.mxu0 0.0
    %464 = vmatprep.subr.mxu0 0.0
    %465 = vmatpush1.msra.mxu0 0.0
    %466 = vmatprep.subr.mxu0 0.0
    %467 = vmatpush1.msra.mxu0 0.0
    %468 = vmatprep.subr.mxu0 0.0
    %469 = vmatpush1.msra.mxu0 0.0
    %470 = vmatprep.subr.mxu0 0.0
    %471 = vmatpush1.msra.mxu0 0.0
    %472 = vmatprep.subr.mxu0 0.0
    %473 = vmatpush1.msra.mxu0 0.0
    %474 = vmatprep.subr.mxu0 0.0
    %475 = vmatpush1.msra.mxu0 0.0
    %476 = vmatprep.subr.mxu0 0.0
    %477 = vmatpush1.msra.mxu0 0.0
    %478 = vmatprep.subr.mxu0 0.0
    %479 = vmatpush1.msra.mxu0 0.0
    %480 = vmatprep.subr.mxu0 0.0
    %481 = vmatpush1.msra.mxu0 0.0
    %482 = vmatprep.mubr.f32.mxu0 0.0
    %483 = vmatmul.mubr.f32.gmra.mrb[0].mxu0 %v416
    %v484 = vpop.f32.mrb[0].mxu0
    %v485 = vadd.f32 0.0, %v484
    %v486 = vpop.f32.mrb[0].mxu0
    %487 = vdwg.mxu0
    %v489 = vsel %vm33, %v303, 0
    %491 = vmatprep.subr.mxu0 0.0
    %492 = vmatpush1.xpose.msra.mxu0 %v331
    %493 = vmatprep.subr.mxu0 0.0
    %494 = vmatpush1.xpose.msra.mxu0 0.0
    %495 = vmatprep.subr.mxu0 0.0
    %496 = vmatpush1.xpose.msra.mxu0 0.0
    %497 = vmatprep.subr.mxu0 0.0
    %498 = vmatpush1.xpose.msra.mxu0 0.0
    %499 = vmatprep.subr.mxu0 0.0
    %500 = vmatpush1.xpose.msra.mxu0 0.0
    %501 = vmatprep.subr.mxu0 0.0
    %502 = vmatpush1.xpose.msra.mxu0 0.0
    %503 = vmatprep.subr.mxu0 0.0
    %504 = vmatpush1.xpose.msra.mxu0 0.0
    %505 = vmatprep.subr.mxu0 0.0
    %506 = vmatpush1.xpose.msra.mxu0 0.0
    %507 = vmatprep.subr.mxu0 0.0
    %508 = vmatpush1.xpose.msra.mxu0 0.0
    %509 = vmatprep.subr.mxu0 0.0
    %510 = vmatpush1.xpose.msra.mxu0 0.0
    %511 = vmatprep.subr.mxu0 0.0
    %512 = vmatpush1.xpose.msra.mxu0 0.0
    %513 = vmatprep.subr.mxu0 0.0
    %514 = vmatpush1.xpose.msra.mxu0 0.0
    %515 = vmatprep.subr.mxu0 0.0
    %516 = vmatpush1.xpose.msra.mxu0 0.0
    %517 = vmatprep.subr.mxu0 0.0
    %518 = vmatpush1.xpose.msra.mxu0 0.0
    %519 = vmatprep.subr.mxu0 0.0
    %520 = vmatpush1.xpose.msra.mxu0 0.0
    %521 = vmatprep.subr.mxu0 0.0
    %522 = vmatpush1.xpose.msra.mxu0 0.0
    %523 = vmatprep.subr.mxu0 0.0
    %524 = vmatpush1.xpose.msra.mxu0 0.0
    %525 = vmatprep.subr.mxu0 0.0
    %526 = vmatpush1.xpose.msra.mxu0 0.0
    %527 = vmatprep.subr.mxu0 0.0
    %528 = vmatpush1.xpose.msra.mxu0 0.0
    %529 = vmatprep.subr.mxu0 0.0
    %530 = vmatpush1.xpose.msra.mxu0 0.0
    %531 = vmatprep.subr.mxu0 0.0
    %532 = vmatpush1.xpose.msra.mxu0 0.0
    %533 = vmatprep.subr.mxu0 0.0
    %534 = vmatpush1.xpose.msra.mxu0 0.0
    %535 = vmatprep.subr.mxu0 0.0
    %536 = vmatpush1.xpose.msra.mxu0 0.0
    %537 = vmatprep.subr.mxu0 0.0
    %538 = vmatpush1.xpose.msra.mxu0 0.0
    %539 = vmatprep.subr.mxu0 0.0
    %540 = vmatpush1.xpose.msra.mxu0 0.0
    %541 = vmatprep.subr.mxu0 0.0
    %542 = vmatpush1.xpose.msra.mxu0 0.0
    %543 = vmatprep.subr.mxu0 0.0
    %544 = vmatpush1.xpose.msra.mxu0 0.0
    %545 = vmatprep.subr.mxu0 0.0
    %546 = vmatpush1.xpose.msra.mxu0 0.0
    %547 = vmatprep.subr.mxu0 0.0
    %548 = vmatpush1.xpose.msra.mxu0 0.0
    %549 = vmatprep.subr.mxu0 0.0
    %550 = vmatpush1.xpose.msra.mxu0 0.0
    %551 = vmatprep.subr.mxu0 0.0
    %552 = vmatpush1.xpose.msra.mxu0 0.0
    %553 = vmatprep.subr.mxu0 0.0
    %554 = vmatpush1.xpose.msra.mxu0 0.0
    %555 = vmatprep.mubr.f32.mxu0 0.0
    %556 = vmatmul.mubr.f32.gmra.mrb[0].mxu0 %v489
    %v557 = vpop.f32.mrb[0].mxu0
    %v558 = vadd.f32 0.0, %v557
    %v559 = vpop.f32.mrb[0].mxu0
    %560 = vdwg.mxu0
    %v561 = vsel %vm403, %v558, -inf
    %562 = vmax.xlane.f32.xlu0 %v561
    %v563 = vpop.xlane.xlu0 %562
    %v564 = vsub.f32 %v558, %v563
    %v565 = vmul.f32 %v564, 1.442695
    %v566 = vpow.pop %v565
    %v567 = vsel %vm403, %v566, 0.0
    %568 = vadd.xlane.f32.xlu0 %v567
    %v569 = vpop.xlane.xlu0 %568
    %v570 = vrcp.pop %v569
    %v571 = vmul.f32 %v566, %v570
    %v573 = vsel %vm403, %v571, 0
    %575 = vmatprep.subr.mxu0 0.0
    %576 = vmatpush1.msra.mxu0 %v321
    %577 = vmatprep.subr.mxu0 0.0
    %578 = vmatpush1.msra.mxu0 0.0
    %579 = vmatprep.subr.mxu0 0.0
    %580 = vmatpush1.msra.mxu0 0.0
    %581 = vmatprep.subr.mxu0 0.0
    %582 = vmatpush1.msra.mxu0 0.0
    %583 = vmatprep.subr.mxu0 0.0
    %584 = vmatpush1.msra.mxu0 0.0
    %585 = vmatprep.subr.mxu0 0.0
    %586 = vmatpush1.msra.mxu0 0.0
    %587 = vmatprep.subr.mxu0 0.0
    %588 = vmatpush1.msra.mxu0 0.0
    %589 = vmatprep.subr.mxu0 0.0
    %590 = vmatpush1.msra.mxu0 0.0
    %591 = vmatprep.subr.mxu0 0.0
    %592 = vmatpush1.msra.mxu0 0.0
    %593 = vmatprep.subr.mxu0 0.0
    %594 = vmatpush1.msra.mxu0 0.0
    %595 = vmatprep.subr.mxu0 0.0
    %596 = vmatpush1.msra.mxu0 0.0
    %597 = vmatprep.subr.mxu0 0.0
    %598 = vmatpush1.msra.mxu0 0.0
    %599 = vmatprep.subr.mxu0 0.0
    %600 = vmatpush1.msra.mxu0 0.0
    %601 = vmatprep.subr.mxu0 0.0
    %602 = vmatpush1.msra.mxu0 0.0
    %603 = vmatprep.subr.mxu0 0.0
    %604 = vmatpush1.msra.mxu0 0.0
    %605 = vmatprep.subr.mxu0 0.0
    %606 = vmatpush1.msra.mxu0 0.0
    %607 = vmatprep.subr.mxu0 0.0
    %608 = vmatpush1.msra.mxu0 0.0
    %609 = vmatprep.subr.mxu0 0.0
    %610 = vmatpush1.msra.mxu0 0.0
    %611 = vmatprep.subr.mxu0 0.0
    %612 = vmatpush1.msra.mxu0 0.0
    %613 = vmatprep.subr.mxu0 0.0
    %614 = vmatpush1.msra.mxu0 0.0
    %615 = vmatprep.subr.mxu0 0.0
    %616 = vmatpush1.msra.mxu0 0.0
    %617 = vmatprep.subr.mxu0 0.0
    %618 = vmatpush1.msra.mxu0 0.0
    %619 = vmatprep.subr.mxu0 0.0
    %620 = vmatpush1.msra.mxu0 0.0
    %621 = vmatprep.subr.mxu0 0.0
    %622 = vmatpush1.msra.mxu0 0.0
    %623 = vmatprep.subr.mxu0 0.0
    %624 = vmatpush1.msra.mxu0 0.0
    %625 = vmatprep.subr.mxu0 0.0
    %626 = vmatpush1.msra.mxu0 0.0
    %627 = vmatprep.subr.mxu0 0.0
    %628 = vmatpush1.msra.mxu0 0.0
    %629 = vmatprep.subr.mxu0 0.0
    %630 = vmatpush1.msra.mxu0 0.0
    %631 = vmatprep.subr.mxu0 0.0
    %632 = vmatpush1.msra.mxu0 0.0
    %633 = vmatprep.subr.mxu0 0.0
    %634 = vmatpush1.msra.mxu0 0.0
    %635 = vmatprep.subr.mxu0 0.0
    %636 = vmatpush1.msra.mxu0 0.0
    %637 = vmatprep.subr.mxu0 0.0
    %638 = vmatpush1.msra.mxu0 0.0
    %639 = vmatprep.mubr.f32.mxu0 0.0
    %640 = vmatmul.mubr.f32.gmra.mrb[0].mxu0 %v573
    %v641 = vpop.f32.mrb[0].mxu0
    %v642 = vadd.f32 0.0, %v641
    %v643 = vpop.f32.mrb[0].mxu0
    %644 = vdwg.mxu0
    %v646 = vsel %vm33, %v310, 0
    %648 = vmatprep.subr.mxu0 0.0
    %649 = vmatpush1.xpose.msra.mxu0 %v331
    %650 = vmatprep.subr.mxu0 0.0
    %651 = vmatpush1.xpose.msra.mxu0 0.0
    %652 = vmatprep.subr.mxu0 0.0
    %653 = vmatpush1.xpose.msra.mxu0 0.0
    %654 = vmatprep.subr.mxu0 0.0
    %655 = vmatpush1.xpose.msra.mxu0 0.0
    %656 = vmatprep.subr.mxu0 0.0
    %657 = vmatpush1.xpose.msra.mxu0 0.0
    %658 = vmatprep.subr.mxu0 0.0
    %659 = vmatpush1.xpose.msra.mxu0 0.0
    %660 = vmatprep.subr.mxu0 0.0
    %661 = vmatpush1.xpose.msra.mxu0 0.0
    %662 = vmatprep.subr.mxu0 0.0
    %663 = vmatpush1.xpose.msra.mxu0 0.0
    %664 = vmatprep.subr.mxu0 0.0
    %665 = vmatpush1.xpose.msra.mxu0 0.0
    %666 = vmatprep.subr.mxu0 0.0
    %667 = vmatpush1.xpose.msra.mxu0 0.0
    %668 = vmatprep.subr.mxu0 0.0
    %669 = vmatpush1.xpose.msra.mxu0 0.0
    %670 = vmatprep.subr.mxu0 0.0
    %671 = vmatpush1.xpose.msra.mxu0 0.0
    %672 = vmatprep.subr.mxu0 0.0
    %673 = vmatpush1.xpose.msra.mxu0 0.0
    %674 = vmatprep.subr.mxu0 0.0
    %675 = vmatpush1.xpose.msra.mxu0 0.0
    %676 = vmatprep.subr.mxu0 0.0
    %677 = vmatpush1.xpose.msra.mxu0 0.0
    %678 = vmatprep.subr.mxu0 0.0
    %679 = vmatpush1.xpose.msra.mxu0 0.0
    %680 = vmatprep.subr.mxu0 0.0
    %681 = vmatpush1.xpose.msra.mxu0 0.0
    %682 = vmatprep.subr.mxu0 0.0
    %683 = vmatpush1.xpose.msra.mxu0 0.0
    %684 = vmatprep.subr.mxu0 0.0
    %685 = vmatpush1.xpose.msra.mxu0 0.0
    %686 = vmatprep.subr.mxu0 0.0
    %687 = vmatpush1.xpose.msra.mxu0 0.0
    %688 = vmatprep.subr.mxu0 0.0
    %689 = vmatpush1.xpose.msra.mxu0 0.0
    %690 = vmatprep.subr.mxu0 0.0
    %691 = vmatpush1.xpose.msra.mxu0 0.0
    %692 = vmatprep.subr.mxu0 0.0
    %693 = vmatpush1.xpose.msra.mxu0 0.0
    %694 = vmatprep.subr.mxu0 0.0
    %695 = vmatpush1.xpose.msra.mxu0 0.0
    %696 = vmatprep.subr.mxu0 0.0
    %697 = vmatpush1.xpose.msra.mxu0 0.0
    %698 = vmatprep.subr.mxu0 0.0
    %699 = vmatpush1.xpose.msra.mxu0 0.0
    %700 = vmatprep.subr.mxu0 0.0
    %701 = vmatpush1.xpose.msra.mxu0 0.0
    %702 = vmatprep.subr.mxu0 0.0
    %703 = vmatpush1.xpose.msra.mxu0 0.0
    %704 = vmatprep.subr.mxu0 0.0
    %705 = vmatpush1.xpose.msra.mxu0 0.0
    %706 = vmatprep.subr.mxu0 0.0
    %707 = vmatpush1.xpose.msra.mxu0 0.0
    %708 = vmatprep.subr.mxu0 0.0
    %709 = vmatpush1.xpose.msra.mxu0 0.0
    %710 = vmatprep.subr.mxu0 0.0
    %711 = vmatpush1.xpose.msra.mxu0 0.0
    %712 = vmatprep.mubr.f32.mxu0 0.0
    %713 = vmatmul.mubr.f32.gmra.mrb[0].mxu0 %v646
    %v714 = vpop.f32.mrb[0].mxu0
    %v715 = vadd.f32 0.0, %v714
    %v716 = vpop.f32.mrb[0].mxu0
    %717 = vdwg.mxu0
    %v718 = vsel %vm403, %v715, -inf
    %719 = vmax.xlane.f32.xlu0 %v718
    %v720 = vpop.xlane.xlu0 %719
    %v721 = vsub.f32 %v715, %v720
    %v722 = vmul.f32 %v721, 1.442695
    %v723 = vpow.pop %v722
    %v724 = vsel %vm403, %v723, 0.0
    %725 = vadd.xlane.f32.xlu0 %v724
    %v726 = vpop.xlane.xlu0 %725
    %v727 = vrcp.pop %v726
    %v728 = vmul.f32 %v723, %v727
    %v730 = vsel %vm403, %v728, 0
    %732 = vmatprep.subr.mxu0 0.0
    %733 = vmatpush1.msra.mxu0 %v323
    %734 = vmatprep.subr.mxu0 0.0
    %735 = vmatpush1.msra.mxu0 0.0
    %736 = vmatprep.subr.mxu0 0.0
    %737 = vmatpush1.msra.mxu0 0.0
    %738 = vmatprep.subr.mxu0 0.0
    %739 = vmatpush1.msra.mxu0 0.0
    %740 = vmatprep.subr.mxu0 0.0
    %741 = vmatpush1.msra.mxu0 0.0
    %742 = vmatprep.subr.mxu0 0.0
    %743 = vmatpush1.msra.mxu0 0.0
    %744 = vmatprep.subr.mxu0 0.0
    %745 = vmatpush1.msra.mxu0 0.0
    %746 = vmatprep.subr.mxu0 0.0
    %747 = vmatpush1.msra.mxu0 0.0
    %748 = vmatprep.subr.mxu0 0.0
    %749 = vmatpush1.msra.mxu0 0.0
    %750 = vmatprep.subr.mxu0 0.0
    %751 = vmatpush1.msra.mxu0 0.0
    %752 = vmatprep.subr.mxu0 0.0
    %753 = vmatpush1.msra.mxu0 0.0
    %754 = vmatprep.subr.mxu0 0.0
    %755 = vmatpush1.msra.mxu0 0.0
    %756 = vmatprep.subr.mxu0 0.0
    %757 = vmatpush1.msra.mxu0 0.0
    %758 = vmatprep.subr.mxu0 0.0
    %759 = vmatpush1.msra.mxu0 0.0
    %760 = vmatprep.subr.mxu0 0.0
    %761 = vmatpush1.msra.mxu0 0.0
    %762 = vmatprep.subr.mxu0 0.0
    %763 = vmatpush1.msra.mxu0 0.0
    %764 = vmatprep.subr.mxu0 0.0
    %765 = vmatpush1.msra.mxu0 0.0
    %766 = vmatprep.subr.mxu0 0.0
    %767 = vmatpush1.msra.mxu0 0.0
    %768 = vmatprep.subr.mxu0 0.0
    %769 = vmatpush1.msra.mxu0 0.0
    %770 = vmatprep.subr.mxu0 0.0
    %771 = vmatpush1.msra.mxu0 0.0
    %772 = vmatprep.subr.mxu0 0.0
    %773 = vmatpush1.msra.mxu0 0.0
    %774 = vmatprep.subr.mxu0 0.0
    %775 = vmatpush1.msra.mxu0 0.0
    %776 = vmatprep.subr.mxu0 0.0
    %777 = vmatpush1.msra.mxu0 0.0
    %778 = vmatprep.subr.mxu0 0.0
    %779 = vmatpush1.msra.mxu0 0.0
    %780 = vmatprep.subr.mxu0 0.0
    %781 = vmatpush1.msra.mxu0 0.0
    %782 = vmatprep.subr.mxu0 0.0
    %783 = vmatpush1.msra.mxu0 0.0
    %784 = vmatprep.subr.mxu0 0.0
    %785 = vmatpush1.msra.mxu0 0.0
    %786 = vmatprep.subr.mxu0 0.0
    %787 = vmatpush1.msra.mxu0 0.0
    %788 = vmatprep.subr.mxu0 0.0
    %789 = vmatpush1.msra.mxu0 0.0
    %790 = vmatprep.subr.mxu0 0.0
    %791 = vmatpush1.msra.mxu0 0.0
    %792 = vmatprep.subr.mxu0 0.0
    %793 = vmatpush1.msra.mxu0 0.0
    %794 = vmatprep.subr.mxu0 0.0
    %795 = vmatpush1.msra.mxu0 0.0
    %796 = vmatprep.mubr.f32.mxu0 0.0
    %797 = vmatmul.mubr.f32.gmra.mrb[0].mxu0 %v730
    %v798 = vpop.f32.mrb[0].mxu0
    %v799 = vadd.f32 0.0, %v798
    %v800 = vpop.f32.mrb[0].mxu0
    %801 = vdwg.mxu0
    %v803 = vsel %vm33, %v317, 0
    %805 = vmatprep.subr.mxu0 0.0
    %806 = vmatpush1.xpose.msra.mxu0 %v331
    %807 = vmatprep.subr.mxu0 0.0
    %808 = vmatpush1.xpose.msra.mxu0 0.0
    %809 = vmatprep.subr.mxu0 0.0
    %810 = vmatpush1.xpose.msra.mxu0 0.0
    %811 = vmatprep.subr.mxu0 0.0
    %812 = vmatpush1.xpose.msra.mxu0 0.0
    %813 = vmatprep.subr.mxu0 0.0
    %814 = vmatpush1.xpose.msra.mxu0 0.0
    %815 = vmatprep.subr.mxu0 0.0
    %816 = vmatpush1.xpose.msra.mxu0 0.0
    %817 = vmatprep.subr.mxu0 0.0
    %818 = vmatpush1.xpose.msra.mxu0 0.0
    %819 = vmatprep.subr.mxu0 0.0
    %820 = vmatpush1.xpose.msra.mxu0 0.0
    %821 = vmatprep.subr.mxu0 0.0
    %822 = vmatpush1.xpose.msra.mxu0 0.0
    %823 = vmatprep.subr.mxu0 0.0
    %824 = vmatpush1.xpose.msra.mxu0 0.0
    %825 = vmatprep.subr.mxu0 0.0
    %826 = vmatpush1.xpose.msra.mxu0 0.0
    %827 = vmatprep.subr.mxu0 0.0
    %828 = vmatpush1.xpose.msra.mxu0 0.0
    %829 = vmatprep.subr.mxu0 0.0
    %830 = vmatpush1.xpose.msra.mxu0 0.0
    %831 = vmatprep.subr.mxu0 0.0
    %832 = vmatpush1.xpose.msra.mxu0 0.0
    %833 = vmatprep.subr.mxu0 0.0
    %834 = vmatpush1.xpose.msra.mxu0 0.0
    %835 = vmatprep.subr.mxu0 0.0
    %836 = vmatpush1.xpose.msra.mxu0 0.0
    %837 = vmatprep.subr.mxu0 0.0
    %838 = vmatpush1.xpose.msra.mxu0 0.0
    %839 = vmatprep.subr.mxu0 0.0
    %840 = vmatpush1.xpose.msra.mxu0 0.0
    %841 = vmatprep.subr.mxu0 0.0
    %842 = vmatpush1.xpose.msra.mxu0 0.0
    %843 = vmatprep.subr.mxu0 0.0
    %844 = vmatpush1.xpose.msra.mxu0 0.0
    %845 = vmatprep.subr.mxu0 0.0
    %846 = vmatpush1.xpose.msra.mxu0 0.0
    %847 = vmatprep.subr.mxu0 0.0
    %848 = vmatpush1.xpose.msra.mxu0 0.0
    %849 = vmatprep.subr.mxu0 0.0
    %850 = vmatpush1.xpose.msra.mxu0 0.0
    %851 = vmatprep.subr.mxu0 0.0
    %852 = vmatpush1.xpose.msra.mxu0 0.0
    %853 = vmatprep.subr.mxu0 0.0
    %854 = vmatpush1.xpose.msra.mxu0 0.0
    %855 = vmatprep.subr.mxu0 0.0
    %856 = vmatpush1.xpose.msra.mxu0 0.0
    %857 = vmatprep.subr.mxu0 0.0
    %858 = vmatpush1.xpose.msra.mxu0 0.0
    %859 = vmatprep.subr.mxu0 0.0
    %860 = vmatpush1.xpose.msra.mxu0 0.0
    %861 = vmatprep.subr.mxu0 0.0
    %862 = vmatpush1.xpose.msra.mxu0 0.0
    %863 = vmatprep.subr.mxu0 0.0
    %864 = vmatpush1.xpose.msra.mxu0 0.0
    %865 = vmatprep.subr.mxu0 0.0
    %866 = vmatpush1.xpose.msra.mxu0 0.0
    %867 = vmatprep.subr.mxu0 0.0
    %868 = vmatpush1.xpose.msra.mxu0 0.0
    %869 = vmatprep.mubr.f32.mxu0 0.0
    %870 = vmatmul.mubr.f32.gmra.mrb[0].mxu0 %v803
    %v871 = vpop.f32.mrb[0].mxu0
    %v872 = vadd.f32 0.0, %v871
    %v873 = vpop.f32.mrb[0].mxu0
    %874 = vdwg.mxu0
    %v875 = vsel %vm403, %v872, -inf
    %876 = vmax.xlane.f32.xlu0 %v875
    %v877 = vpop.xlane.xlu0 %876
    %v878 = vsub.f32 %v872, %v877
    %v879 = vmul.f32 %v878, 1.442695
    %v880 = vpow.pop %v879
    %v881 = vsel %vm403, %v880, 0.0
    %882 = vadd.xlane.f32.xlu0 %v881
    %v883 = vpop.xlane.xlu0 %882
    %v884 = vrcp.pop %v883
    %v885 = vmul.f32 %v880, %v884
    %v887 = vsel %vm403, %v885, 0
    %889 = vmatprep.subr.mxu0 0.0
    %890 = vmatpush1.msra.mxu0 %v325
    %891 = vmatprep.subr.mxu0 0.0
    %892 = vmatpush1.msra.mxu0 0.0
    %893 = vmatprep.subr.mxu0 0.0
    %894 = vmatpush1.msra.mxu0 0.0
    %895 = vmatprep.subr.mxu0 0.0
    %896 = vmatpush1.msra.mxu0 0.0
    %897 = vmatprep.subr.mxu0 0.0
    %898 = vmatpush1.msra.mxu0 0.0
    %899 = vmatprep.subr.mxu0 0.0
    %900 = vmatpush1.msra.mxu0 0.0
    %901 = vmatprep.subr.mxu0 0.0
    %902 = vmatpush1.msra.mxu0 0.0
    %903 = vmatprep.subr.mxu0 0.0
    %904 = vmatpush1.msra.mxu0 0.0
    %905 = vmatprep.subr.mxu0 0.0
    %906 = vmatpush1.msra.mxu0 0.0
    %907 = vmatprep.subr.mxu0 0.0
    %908 = vmatpush1.msra.mxu0 0.0
    %909 = vmatprep.subr.mxu0 0.0
    %910 = vmatpush1.msra.mxu0 0.0
    %911 = vmatprep.subr.mxu0 0.0
    %912 = vmatpush1.msra.mxu0 0.0
    %913 = vmatprep.subr.mxu0 0.0
    %914 = vmatpush1.msra.mxu0 0.0
    %915 = vmatprep.subr.mxu0 0.0
    %916 = vmatpush1.msra.mxu0 0.0
    %917 = vmatprep.subr.mxu0 0.0
    %918 = vmatpush1.msra.mxu0 0.0
    %919 = vmatprep.subr.mxu0 0.0
    %920 = vmatpush1.msra.mxu0 0.0
    %921 = vmatprep.subr.mxu0 0.0
    %922 = vmatpush1.msra.mxu0 0.0
    %923 = vmatprep.subr.mxu0 0.0
    %924 = vmatpush1.msra.mxu0 0.0
    %925 = vmatprep.subr.mxu0 0.0
    %926 = vmatpush1.msra.mxu0 0.0
    %927 = vmatprep.subr.mxu0 0.0
    %928 = vmatpush1.msra.mxu0 0.0
    %929 = vmatprep.subr.mxu0 0.0
    %930 = vmatpush1.msra.mxu0 0.0
    %931 = vmatprep.subr.mxu0 0.0
    %932 = vmatpush1.msra.mxu0 0.0
    %933 = vmatprep.subr.mxu0 0.0
    %934 = vmatpush1.msra.mxu0 0.0
    %935 = vmatprep.subr.mxu0 0.0
    %936 = vmatpush1.msra.mxu0 0.0
    %937 = vmatprep.subr.mxu0 0.0
    %938 = vmatpush1.msra.mxu0 0.0
    %939 = vmatprep.subr.mxu0 0.0
    %940 = vmatpush1.msra.mxu0 0.0
    %941 = vmatprep.subr.mxu0 0.0
    %942 = vmatpush1.msra.mxu0 0.0
    %943 = vmatprep.subr.mxu0 0.0
    %944 = vmatpush1.msra.mxu0 0.0
    %945 = vmatprep.subr.mxu0 0.0
    %946 = vmatpush1.msra.mxu0 0.0
    %947 = vmatprep.subr.mxu0 0.0
    %948 = vmatpush1.msra.mxu0 0.0
    %949 = vmatprep.subr.mxu0 0.0
    %950 = vmatpush1.msra.mxu0 0.0
    %951 = vmatprep.subr.mxu0 0.0
    %952 = vmatpush1.msra.mxu0 0.0
    %953 = vmatprep.mubr.f32.mxu0 0.0
    %954 = vmatmul.mubr.f32.gmra.mrb[0].mxu0 %v887
    %v955 = vpop.f32.mrb[0].mxu0
    %v956 = vadd.f32 0.0, %v955
    %v957 = vpop.f32.mrb[0].mxu0
    %958 = vdwg.mxu0
    %v960 = vsel %vm33, %v297, 0
    %v963 = vsel %vm33, %v199, 0
    %965 = vmatprep.subr.mxu0 0.0
    %966 = vmatpush1.xpose.msra.mxu0 %v963
    %967 = vmatprep.subr.mxu0 0.0
    %968 = vmatpush1.xpose.msra.mxu0 0.0
    %969 = vmatprep.subr.mxu0 0.0
    %970 = vmatpush1.xpose.msra.mxu0 0.0
    %971 = vmatprep.subr.mxu0 0.0
    %972 = vmatpush1.xpose.msra.mxu0 0.0
    %973 = vmatprep.subr.mxu0 0.0
    %974 = vmatpush1.xpose.msra.mxu0 0.0
    %975 = vmatprep.subr.mxu0 0.0
    %976 = vmatpush1.xpose.msra.mxu0 0.0
    %977 = vmatprep.subr.mxu0 0.0
    %978 = vmatpush1.xpose.msra.mxu0 0.0
    %979 = vmatprep.subr.mxu0 0.0
    %980 = vmatpush1.xpose.msra.mxu0 0.0
    %981 = vmatprep.subr.mxu0 0.0
    %982 = vmatpush1.xpose.msra.mxu0 0.0
    %983 = vmatprep.subr.mxu0 0.0
    %984 = vmatpush1.xpose.msra.mxu0 0.0
    %985 = vmatprep.subr.mxu0 0.0
    %986 = vmatpush1.xpose.msra.mxu0 0.0
    %987 = vmatprep.subr.mxu0 0.0
    %988 = vmatpush1.xpose.msra.mxu0 0.0
    %989 = vmatprep.subr.mxu0 0.0
    %990 = vmatpush1.xpose.msra.mxu0 0.0
    %991 = vmatprep.subr.mxu0 0.0
    %992 = vmatpush1.xpose.msra.mxu0 0.0
    %993 = vmatprep.subr.mxu0 0.0
    %994 = vmatpush1.xpose.msra.mxu0 0.0
    %995 = vmatprep.subr.mxu0 0.0
    %996 = vmatpush1.xpose.msra.mxu0 0.0
    %997 = vmatprep.subr.mxu0 0.0
    %998 = vmatpush1.xpose.msra.mxu0 0.0
    %999 = vmatprep.subr.mxu0 0.0
    %1000 = vmatpush1.xpose.msra.mxu0 0.0
    %1001 = vmatprep.subr.mxu0 0.0
    %1002 = vmatpush1.xpose.msra.mxu0 0.0
    %1003 = vmatprep.subr.mxu0 0.0
    %1004 = vmatpush1.xpose.msra.mxu0 0.0
    %1005 = vmatprep.subr.mxu0 0.0
    %1006 = vmatpush1.xpose.msra.mxu0 0.0
    %1007 = vmatprep.subr.mxu0 0.0
    %1008 = vmatpush1.xpose.msra.mxu0 0.0
    %1009 = vmatprep.subr.mxu0 0.0
    %1010 = vmatpush1.xpose.msra.mxu0 0.0
    %1011 = vmatprep.subr.mxu0 0.0
    %1012 = vmatpush1.xpose.msra.mxu0 0.0
    %1013 = vmatprep.subr.mxu0 0.0
    %1014 = vmatpush1.xpose.msra.mxu0 0.0
    %1015 = vmatprep.subr.mxu0 0.0
    %1016 = vmatpush1.xpose.msra.mxu0 0.0
    %1017 = vmatprep.subr.mxu0 0.0
    %1018 = vmatpush1.xpose.msra.mxu0 0.0
    %1019 = vmatprep.subr.mxu0 0.0
    %1020 = vmatpush1.xpose.msra.mxu0 0.0
    %1021 = vmatprep.subr.mxu0 0.0
    %1022 = vmatpush1.xpose.msra.mxu0 0.0
    %1023 = vmatprep.subr.mxu0 0.0
    %1024 = vmatpush1.xpose.msra.mxu0 0.0
    %1025 = vmatprep.subr.mxu0 0.0
    %1026 = vmatpush1.xpose.msra.mxu0 0.0
    %1027 = vmatprep.subr.mxu0 0.0
    %1028 = vmatpush1.xpose.msra.mxu0 0.0
    %1029 = vmatprep.mubr.f32.mxu0 0.0
    %1030 = vmatmul.mubr.f32.gmra.mrb[0].mxu0 %v960
    %v1031 = vpop.f32.mrb[0].mxu0
    %v1032 = vadd.f32 0.0, %v1031
    %v1033 = vpop.f32.mrb[0].mxu0
    %1034 = vdwg.mxu0
    %v1035 = vsel %vm403, %v1032, -inf
    %1036 = vmax.xlane.f32.xlu0 %v1035
    %v1037 = vpop.xlane.xlu0 %1036
    %v1038 = vsub.f32 %v1032, %v1037
    %v1039 = vmul.f32 %v1038, 1.442695
    %v1040 = vpow.pop %v1039
    %v1041 = vsel %vm403, %v1040, 0.0
    %1042 = vadd.xlane.f32.xlu0 %v1041
    %v1043 = vpop.xlane.xlu0 %1042
    %v1044 = vrcp.pop %v1043
    %v1045 = vmul.f32 %v1040, %v1044
    %v1047 = vsel %vm403, %v1045, 0
    %1049 = vmatprep.subr.mxu0 0.0
    %1050 = vmatpush1.msra.mxu0 %v320
    %1051 = vmatprep.subr.mxu0 0.0
    %1052 = vmatpush1.msra.mxu0 0.0
    %1053 = vmatprep.subr.mxu0 0.0
    %1054 = vmatpush1.msra.mxu0 0.0
    %1055 = vmatprep.subr.mxu0 0.0
    %1056 = vmatpush1.msra.mxu0 0.0
    %1057 = vmatprep.subr.mxu0 0.0
    %1058 = vmatpush1.msra.mxu0 0.0
    %1059 = vmatprep.subr.mxu0 0.0
    %1060 = vmatpush1.msra.mxu0 0.0
    %1061 = vmatprep.subr.mxu0 0.0
    %1062 = vmatpush1.msra.mxu0 0.0
    %1063 = vmatprep.subr.mxu0 0.0
    %1064 = vmatpush1.msra.mxu0 0.0
    %1065 = vmatprep.subr.mxu0 0.0
    %1066 = vmatpush1.msra.mxu0 0.0
    %1067 = vmatprep.subr.mxu0 0.0
    %1068 = vmatpush1.msra.mxu0 0.0
    %1069 = vmatprep.subr.mxu0 0.0
    %1070 = vmatpush1.msra.mxu0 0.0
    %1071 = vmatprep.subr.mxu0 0.0
    %1072 = vmatpush1.msra.mxu0 0.0
    %1073 = vmatprep.subr.mxu0 0.0
    %1074 = vmatpush1.msra.mxu0 0.0
    %1075 = vmatprep.subr.mxu0 0.0
    %1076 = vmatpush1.msra.mxu0 0.0
    %1077 = vmatprep.subr.mxu0 0.0
    %1078 = vmatpush1.msra.mxu0 0.0
    %1079 = vmatprep.subr.mxu0 0.0
    %1080 = vmatpush1.msra.mxu0 0.0
    %1081 = vmatprep.subr.mxu0 0.0
    %1082 = vmatpush1.msra.mxu0 0.0
    %1083 = vmatprep.subr.mxu0 0.0
    %1084 = vmatpush1.msra.mxu0 0.0
    %1085 = vmatprep.subr.mxu0 0.0
    %1086 = vmatpush1.msra.mxu0 0.0
    %1087 = vmatprep.subr.mxu0 0.0
    %1088 = vmatpush1.msra.mxu0 0.0
    %1089 = vmatprep.subr.mxu0 0.0
    %1090 = vmatpush1.msra.mxu0 0.0
    %1091 = vmatprep.subr.mxu0 0.0
    %1092 = vmatpush1.msra.mxu0 0.0
    %1093 = vmatprep.subr.mxu0 0.0
    %1094 = vmatpush1.msra.mxu0 0.0
    %1095 = vmatprep.subr.mxu0 0.0
    %1096 = vmatpush1.msra.mxu0 0.0
    %1097 = vmatprep.subr.mxu0 0.0
    %1098 = vmatpush1.msra.mxu0 0.0
    %1099 = vmatprep.subr.mxu0 0.0
    %1100 = vmatpush1.msra.mxu0 0.0
    %1101 = vmatprep.subr.mxu0 0.0
    %1102 = vmatpush1.msra.mxu0 0.0
    %1103 = vmatprep.subr.mxu0 0.0
    %1104 = vmatpush1.msra.mxu0 0.0
    %1105 = vmatprep.subr.mxu0 0.0
    %1106 = vmatpush1.msra.mxu0 0.0
    %1107 = vmatprep.subr.mxu0 0.0
    %1108 = vmatpush1.msra.mxu0 0.0
    %1109 = vmatprep.subr.mxu0 0.0
    %1110 = vmatpush1.msra.mxu0 0.0
    %1111 = vmatprep.subr.mxu0 0.0
    %1112 = vmatpush1.msra.mxu0 0.0
    %1113 = vmatprep.mubr.f32.mxu0 0.0
    %1114 = vmatmul.mubr.f32.gmra.mrb[0].mxu0 %v1047
    %v1115 = vpop.f32.mrb[0].mxu0
    %v1116 = vadd.f32 0.0, %v1115
    %v1117 = vpop.f32.mrb[0].mxu0
    %1118 = vdwg.mxu0
    %v1120 = vsel %vm33, %v304, 0
    %1122 = vmatprep.subr.mxu0 0.0
    %1123 = vmatpush1.xpose.msra.mxu0 %v963
    %1124 = vmatprep.subr.mxu0 0.0
    %1125 = vmatpush1.xpose.msra.mxu0 0.0
    %1126 = vmatprep.subr.mxu0 0.0
    %1127 = vmatpush1.xpose.msra.mxu0 0.0
    %1128 = vmatprep.subr.mxu0 0.0
    %1129 = vmatpush1.xpose.msra.mxu0 0.0
    %1130 = vmatprep.subr.mxu0 0.0
    %1131 = vmatpush1.xpose.msra.mxu0 0.0
    %1132 = vmatprep.subr.mxu0 0.0
    %1133 = vmatpush1.xpose.msra.mxu0 0.0
    %1134 = vmatprep.subr.mxu0 0.0
    %1135 = vmatpush1.xpose.msra.mxu0 0.0
    %1136 = vmatprep.subr.mxu0 0.0
    %1137 = vmatpush1.xpose.msra.mxu0 0.0
    %1138 = vmatprep.subr.mxu0 0.0
    %1139 = vmatpush1.xpose.msra.mxu0 0.0
    %1140 = vmatprep.subr.mxu0 0.0
    %1141 = vmatpush1.xpose.msra.mxu0 0.0
    %1142 = vmatprep.subr.mxu0 0.0
    %1143 = vmatpush1.xpose.msra.mxu0 0.0
    %1144 = vmatprep.subr.mxu0 0.0
    %1145 = vmatpush1.xpose.msra.mxu0 0.0
    %1146 = vmatprep.subr.mxu0 0.0
    %1147 = vmatpush1.xpose.msra.mxu0 0.0
    %1148 = vmatprep.subr.mxu0 0.0
    %1149 = vmatpush1.xpose.msra.mxu0 0.0
    %1150 = vmatprep.subr.mxu0 0.0
    %1151 = vmatpush1.xpose.msra.mxu0 0.0
    %1152 = vmatprep.subr.mxu0 0.0
    %1153 = vmatpush1.xpose.msra.mxu0 0.0
    %1154 = vmatprep.subr.mxu0 0.0
    %1155 = vmatpush1.xpose.msra.mxu0 0.0
    %1156 = vmatprep.subr.mxu0 0.0
    %1157 = vmatpush1.xpose.msra.mxu0 0.0
    %1158 = vmatprep.subr.mxu0 0.0
    %1159 = vmatpush1.xpose.msra.mxu0 0.0
    %1160 = vmatprep.subr.mxu0 0.0
    %1161 = vmatpush1.xpose.msra.mxu0 0.0
    %1162 = vmatprep.subr.mxu0 0.0
    %1163 = vmatpush1.xpose.msra.mxu0 0.0
    %1164 = vmatprep.subr.mxu0 0.0
    %1165 = vmatpush1.xpose.msra.mxu0 0.0
    %1166 = vmatprep.subr.mxu0 0.0
    %1167 = vmatpush1.xpose.msra.mxu0 0.0
    %1168 = vmatprep.subr.mxu0 0.0
    %1169 = vmatpush1.xpose.msra.mxu0 0.0
    %1170 = vmatprep.subr.mxu0 0.0
    %1171 = vmatpush1.xpose.msra.mxu0 0.0
    %1172 = vmatprep.subr.mxu0 0.0
    %1173 = vmatpush1.xpose.msra.mxu0 0.0
    %1174 = vmatprep.subr.mxu0 0.0
    %1175 = vmatpush1.xpose.msra.mxu0 0.0
    %1176 = vmatprep.subr.mxu0 0.0
    %1177 = vmatpush1.xpose.msra.mxu0 0.0
    %1178 = vmatprep.subr.mxu0 0.0
    %1179 = vmatpush1.xpose.msra.mxu0 0.0
    %1180 = vmatprep.subr.mxu0 0.0
    %1181 = vmatpush1.xpose.msra.mxu0 0.0
    %1182 = vmatprep.subr.mxu0 0.0
    %1183 = vmatpush1.xpose.msra.mxu0 0.0
    %1184 = vmatprep.subr.mxu0 0.0
    %1185 = vmatpush1.xpose.msra.mxu0 0.0
    %1186 = vmatprep.mubr.f32.mxu0 0.0
    %1187 = vmatmul.mubr.f32.gmra.mrb[0].mxu0 %v1120
    %v1188 = vpop.f32.mrb[0].mxu0
    %v1189 = vadd.f32 0.0, %v1188
    %v1190 = vpop.f32.mrb[0].mxu0
    %1191 = vdwg.mxu0
    %v1192 = vsel %vm403, %v1189, -inf
    %1193 = vmax.xlane.f32.xlu0 %v1192
    %v1194 = vpop.xlane.xlu0 %1193
    %v1195 = vsub.f32 %v1189, %v1194
    %v1196 = vmul.f32 %v1195, 1.442695
    %v1197 = vpow.pop %v1196
    %v1198 = vsel %vm403, %v1197, 0.0
    %1199 = vadd.xlane.f32.xlu0 %v1198
    %v1200 = vpop.xlane.xlu0 %1199
    %v1201 = vrcp.pop %v1200
    %v1202 = vmul.f32 %v1197, %v1201
    %v1204 = vsel %vm403, %v1202, 0
    %1206 = vmatprep.subr.mxu0 0.0
    %1207 = vmatpush1.msra.mxu0 %v322
    %1208 = vmatprep.subr.mxu0 0.0
    %1209 = vmatpush1.msra.mxu0 0.0
    %1210 = vmatprep.subr.mxu0 0.0
    %1211 = vmatpush1.msra.mxu0 0.0
    %1212 = vmatprep.subr.mxu0 0.0
    %1213 = vmatpush1.msra.mxu0 0.0
    %1214 = vmatprep.subr.mxu0 0.0
    %1215 = vmatpush1.msra.mxu0 0.0
    %1216 = vmatprep.subr.mxu0 0.0
    %1217 = vmatpush1.msra.mxu0 0.0
    %1218 = vmatprep.subr.mxu0 0.0
    %1219 = vmatpush1.msra.mxu0 0.0
    %1220 = vmatprep.subr.mxu0 0.0
    %1221 = vmatpush1.msra.mxu0 0.0
    %1222 = vmatprep.subr.mxu0 0.0
    %1223 = vmatpush1.msra.mxu0 0.0
    %1224 = vmatprep.subr.mxu0 0.0
    %1225 = vmatpush1.msra.mxu0 0.0
    %1226 = vmatprep.subr.mxu0 0.0
    %1227 = vmatpush1.msra.mxu0 0.0
    %1228 = vmatprep.subr.mxu0 0.0
    %1229 = vmatpush1.msra.mxu0 0.0
    %1230 = vmatprep.subr.mxu0 0.0
    %1231 = vmatpush1.msra.mxu0 0.0
    %1232 = vmatprep.subr.mxu0 0.0
    %1233 = vmatpush1.msra.mxu0 0.0
    %1234 = vmatprep.subr.mxu0 0.0
    %1235 = vmatpush1.msra.mxu0 0.0
    %1236 = vmatprep.subr.mxu0 0.0
    %1237 = vmatpush1.msra.mxu0 0.0
    %1238 = vmatprep.subr.mxu0 0.0
    %1239 = vmatpush1.msra.mxu0 0.0
    %1240 = vmatprep.subr.mxu0 0.0
    %1241 = vmatpush1.msra.mxu0 0.0
    %1242 = vmatprep.subr.mxu0 0.0
    %1243 = vmatpush1.msra.mxu0 0.0
    %1244 = vmatprep.subr.mxu0 0.0
    %1245 = vmatpush1.msra.mxu0 0.0
    %1246 = vmatprep.subr.mxu0 0.0
    %1247 = vmatpush1.msra.mxu0 0.0
    %1248 = vmatprep.subr.mxu0 0.0
    %1249 = vmatpush1.msra.mxu0 0.0
    %1250 = vmatprep.subr.mxu0 0.0
    %1251 = vmatpush1.msra.mxu0 0.0
    %1252 = vmatprep.subr.mxu0 0.0
    %1253 = vmatpush1.msra.mxu0 0.0
    %1254 = vmatprep.subr.mxu0 0.0
    %1255 = vmatpush1.msra.mxu0 0.0
    %1256 = vmatprep.subr.mxu0 0.0
    %1257 = vmatpush1.msra.mxu0 0.0
    %1258 = vmatprep.subr.mxu0 0.0
    %1259 = vmatpush1.msra.mxu0 0.0
    %1260 = vmatprep.subr.mxu0 0.0
    %1261 = vmatpush1.msra.mxu0 0.0
    %1262 = vmatprep.subr.mxu0 0.0
    %1263 = vmatpush1.msra.mxu0 0.0
    %1264 = vmatprep.subr.mxu0 0.0
    %1265 = vmatpush1.msra.mxu0 0.0
    %1266 = vmatprep.subr.mxu0 0.0
    %1267 = vmatpush1.msra.mxu0 0.0
    %1268 = vmatprep.subr.mxu0 0.0
    %1269 = vmatpush1.msra.mxu0 0.0
    %1270 = vmatprep.mubr.f32.mxu0 0.0
    %1271 = vmatmul.mubr.f32.gmra.mrb[0].mxu0 %v1204
    %v1272 = vpop.f32.mrb[0].mxu0
    %v1273 = vadd.f32 0.0, %v1272
    %v1274 = vpop.f32.mrb[0].mxu0
    %1275 = vdwg.mxu0
    %v1277 = vsel %vm33, %v311, 0
    %1279 = vmatprep.subr.mxu0 0.0
    %1280 = vmatpush1.xpose.msra.mxu0 %v963
    %1281 = vmatprep.subr.mxu0 0.0
    %1282 = vmatpush1.xpose.msra.mxu0 0.0
    %1283 = vmatprep.subr.mxu0 0.0
    %1284 = vmatpush1.xpose.msra.mxu0 0.0
    %1285 = vmatprep.subr.mxu0 0.0
    %1286 = vmatpush1.xpose.msra.mxu0 0.0
    %1287 = vmatprep.subr.mxu0 0.0
    %1288 = vmatpush1.xpose.msra.mxu0 0.0
    %1289 = vmatprep.subr.mxu0 0.0
    %1290 = vmatpush1.xpose.msra.mxu0 0.0
    %1291 = vmatprep.subr.mxu0 0.0
    %1292 = vmatpush1.xpose.msra.mxu0 0.0
    %1293 = vmatprep.subr.mxu0 0.0
    %1294 = vmatpush1.xpose.msra.mxu0 0.0
    %1295 = vmatprep.subr.mxu0 0.0
    %1296 = vmatpush1.xpose.msra.mxu0 0.0
    %1297 = vmatprep.subr.mxu0 0.0
    %1298 = vmatpush1.xpose.msra.mxu0 0.0
    %1299 = vmatprep.subr.mxu0 0.0
    %1300 = vmatpush1.xpose.msra.mxu0 0.0
    %1301 = vmatprep.subr.mxu0 0.0
    %1302 = vmatpush1.xpose.msra.mxu0 0.0
    %1303 = vmatprep.subr.mxu0 0.0
    %1304 = vmatpush1.xpose.msra.mxu0 0.0
    %1305 = vmatprep.subr.mxu0 0.0
    %1306 = vmatpush1.xpose.msra.mxu0 0.0
    %1307 = vmatprep.subr.mxu0 0.0
    %1308 = vmatpush1.xpose.msra.mxu0 0.0
    %1309 = vmatprep.subr.mxu0 0.0
    %1310 = vmatpush1.xpose.msra.mxu0 0.0
    %1311 = vmatprep.subr.mxu0 0.0
    %1312 = vmatpush1.xpose.msra.mxu0 0.0
    %1313 = vmatprep.subr.mxu0 0.0
    %1314 = vmatpush1.xpose.msra.mxu0 0.0
    %1315 = vmatprep.subr.mxu0 0.0
    %1316 = vmatpush1.xpose.msra.mxu0 0.0
    %1317 = vmatprep.subr.mxu0 0.0
    %1318 = vmatpush1.xpose.msra.mxu0 0.0
    %1319 = vmatprep.subr.mxu0 0.0
    %1320 = vmatpush1.xpose.msra.mxu0 0.0
    %1321 = vmatprep.subr.mxu0 0.0
    %1322 = vmatpush1.xpose.msra.mxu0 0.0
    %1323 = vmatprep.subr.mxu0 0.0
    %1324 = vmatpush1.xpose.msra.mxu0 0.0
    %1325 = vmatprep.subr.mxu0 0.0
    %1326 = vmatpush1.xpose.msra.mxu0 0.0
    %1327 = vmatprep.subr.mxu0 0.0
    %1328 = vmatpush1.xpose.msra.mxu0 0.0
    %1329 = vmatprep.subr.mxu0 0.0
    %1330 = vmatpush1.xpose.msra.mxu0 0.0
    %1331 = vmatprep.subr.mxu0 0.0
    %1332 = vmatpush1.xpose.msra.mxu0 0.0
    %1333 = vmatprep.subr.mxu0 0.0
    %1334 = vmatpush1.xpose.msra.mxu0 0.0
    %1335 = vmatprep.subr.mxu0 0.0
    %1336 = vmatpush1.xpose.msra.mxu0 0.0
    %1337 = vmatprep.subr.mxu0 0.0
    %1338 = vmatpush1.xpose.msra.mxu0 0.0
    %1339 = vmatprep.subr.mxu0 0.0
    %1340 = vmatpush1.xpose.msra.mxu0 0.0
    %1341 = vmatprep.subr.mxu0 0.0
    %1342 = vmatpush1.xpose.msra.mxu0 0.0
    %1343 = vmatprep.mubr.f32.mxu0 0.0
    %1344 = vmatmul.mubr.f32.gmra.mrb[0].mxu0 %v1277
    %v1345 = vpop.f32.mrb[0].mxu0
    %v1346 = vadd.f32 0.0, %v1345
    %v1347 = vpop.f32.mrb[0].mxu0
    %1348 = vdwg.mxu0
    %v1349 = vsel %vm403, %v1346, -inf
    %1350 = vmax.xlane.f32.xlu0 %v1349
    %v1351 = vpop.xlane.xlu0 %1350
    %v1352 = vsub.f32 %v1346, %v1351
    %v1353 = vmul.f32 %v1352, 1.442695
    %v1354 = vpow.pop %v1353
    %v1355 = vsel %vm403, %v1354, 0.0
    %1356 = vadd.xlane.f32.xlu0 %v1355
    %v1357 = vpop.xlane.xlu0 %1356
    %v1358 = vrcp.pop %v1357
    %v1359 = vmul.f32 %v1354, %v1358
    %v1361 = vsel %vm403, %v1359, 0
    %1363 = vmatprep.subr.mxu0 0.0
    %1364 = vmatpush1.msra.mxu0 %v324
    %1365 = vmatprep.subr.mxu0 0.0
    %1366 = vmatpush1.msra.mxu0 0.0
    %1367 = vmatprep.subr.mxu0 0.0
    %1368 = vmatpush1.msra.mxu0 0.0
    %1369 = vmatprep.subr.mxu0 0.0
    %1370 = vmatpush1.msra.mxu0 0.0
    %1371 = vmatprep.subr.mxu0 0.0
    %1372 = vmatpush1.msra.mxu0 0.0
    %1373 = vmatprep.subr.mxu0 0.0
    %1374 = vmatpush1.msra.mxu0 0.0
    %1375 = vmatprep.subr.mxu0 0.0
    %1376 = vmatpush1.msra.mxu0 0.0
    %1377 = vmatprep.subr.mxu0 0.0
    %1378 = vmatpush1.msra.mxu0 0.0
    %1379 = vmatprep.subr.mxu0 0.0
    %1380 = vmatpush1.msra.mxu0 0.0
    %1381 = vmatprep.subr.mxu0 0.0
    %1382 = vmatpush1.msra.mxu0 0.0
    %1383 = vmatprep.subr.mxu0 0.0
    %1384 = vmatpush1.msra.mxu0 0.0
    %1385 = vmatprep.subr.mxu0 0.0
    %1386 = vmatpush1.msra.mxu0 0.0
    %1387 = vmatprep.subr.mxu0 0.0
    %1388 = vmatpush1.msra.mxu0 0.0
    %1389 = vmatprep.subr.mxu0 0.0
    %1390 = vmatpush1.msra.mxu0 0.0
    %1391 = vmatprep.subr.mxu0 0.0
    %1392 = vmatpush1.msra.mxu0 0.0
    %1393 = vmatprep.subr.mxu0 0.0
    %1394 = vmatpush1.msra.mxu0 0.0
    %1395 = vmatprep.subr.mxu0 0.0
    %1396 = vmatpush1.msra.mxu0 0.0
    %1397 = vmatprep.subr.mxu0 0.0
    %1398 = vmatpush1.msra.mxu0 0.0
    %1399 = vmatprep.subr.mxu0 0.0
    %1400 = vmatpush1.msra.mxu0 0.0
    %1401 = vmatprep.subr.mxu0 0.0
    %1402 = vmatpush1.msra.mxu0 0.0
    %1403 = vmatprep.subr.mxu0 0.0
    %1404 = vmatpush1.msra.mxu0 0.0
    %1405 = vmatprep.subr.mxu0 0.0
    %1406 = vmatpush1.msra.mxu0 0.0
    %1407 = vmatprep.subr.mxu0 0.0
    %1408 = vmatpush1.msra.mxu0 0.0
    %1409 = vmatprep.subr.mxu0 0.0
    %1410 = vmatpush1.msra.mxu0 0.0
    %1411 = vmatprep.subr.mxu0 0.0
    %1412 = vmatpush1.msra.mxu0 0.0
    %1413 = vmatprep.subr.mxu0 0.0
    %1414 = vmatpush1.msra.mxu0 0.0
    %1415 = vmatprep.subr.mxu0 0.0
    %1416 = vmatpush1.msra.mxu0 0.0
    %1417 = vmatprep.subr.mxu0 0.0
    %1418 = vmatpush1.msra.mxu0 0.0
    %1419 = vmatprep.subr.mxu0 0.0
    %1420 = vmatpush1.msra.mxu0 0.0
    %1421 = vmatprep.subr.mxu0 0.0
    %1422 = vmatpush1.msra.mxu0 0.0
    %1423 = vmatprep.subr.mxu0 0.0
    %1424 = vmatpush1.msra.mxu0 0.0
    %1425 = vmatprep.subr.mxu0 0.0
    %1426 = vmatpush1.msra.mxu0 0.0
    %1427 = vmatprep.mubr.f32.mxu0 0.0
    %1428 = vmatmul.mubr.f32.gmra.mrb[0].mxu0 %v1361
    %v1429 = vpop.f32.mrb[0].mxu0
    %v1430 = vadd.f32 0.0, %v1429
    %v1431 = vpop.f32.mrb[0].mxu0
    %1432 = vdwg.mxu0
    %v1434 = vsel %vm33, %v318, 0
    %1436 = vmatprep.subr.mxu0 0.0
    %1437 = vmatpush1.xpose.msra.mxu0 %v963
    %1438 = vmatprep.subr.mxu0 0.0
    %1439 = vmatpush1.xpose.msra.mxu0 0.0
    %1440 = vmatprep.subr.mxu0 0.0
    %1441 = vmatpush1.xpose.msra.mxu0 0.0
    %1442 = vmatprep.subr.mxu0 0.0
    %1443 = vmatpush1.xpose.msra.mxu0 0.0
    %1444 = vmatprep.subr.mxu0 0.0
    %1445 = vmatpush1.xpose.msra.mxu0 0.0
    %1446 = vmatprep.subr.mxu0 0.0
    %1447 = vmatpush1.xpose.msra.mxu0 0.0
    %1448 = vmatprep.subr.mxu0 0.0
    %1449 = vmatpush1.xpose.msra.mxu0 0.0
    %1450 = vmatprep.subr.mxu0 0.0
    %1451 = vmatpush1.xpose.msra.mxu0 0.0
    %1452 = vmatprep.subr.mxu0 0.0
    %1453 = vmatpush1.xpose.msra.mxu0 0.0
    %1454 = vmatprep.subr.mxu0 0.0
    %1455 = vmatpush1.xpose.msra.mxu0 0.0
    %1456 = vmatprep.subr.mxu0 0.0
    %1457 = vmatpush1.xpose.msra.mxu0 0.0
    %1458 = vmatprep.subr.mxu0 0.0
    %1459 = vmatpush1.xpose.msra.mxu0 0.0
    %1460 = vmatprep.subr.mxu0 0.0
    %1461 = vmatpush1.xpose.msra.mxu0 0.0
    %1462 = vmatprep.subr.mxu0 0.0
    %1463 = vmatpush1.xpose.msra.mxu0 0.0
    %1464 = vmatprep.subr.mxu0 0.0
    %1465 = vmatpush1.xpose.msra.mxu0 0.0
    %1466 = vmatprep.subr.mxu0 0.0
    %1467 = vmatpush1.xpose.msra.mxu0 0.0
    %1468 = vmatprep.subr.mxu0 0.0
    %1469 = vmatpush1.xpose.msra.mxu0 0.0
    %1470 = vmatprep.subr.mxu0 0.0
    %1471 = vmatpush1.xpose.msra.mxu0 0.0
    %1472 = vmatprep.subr.mxu0 0.0
    %1473 = vmatpush1.xpose.msra.mxu0 0.0
    %1474 = vmatprep.subr.mxu0 0.0
    %1475 = vmatpush1.xpose.msra.mxu0 0.0
    %1476 = vmatprep.subr.mxu0 0.0
    %1477 = vmatpush1.xpose.msra.mxu0 0.0
    %1478 = vmatprep.subr.mxu0 0.0
    %1479 = vmatpush1.xpose.msra.mxu0 0.0
    %1480 = vmatprep.subr.mxu0 0.0
    %1481 = vmatpush1.xpose.msra.mxu0 0.0
    %1482 = vmatprep.subr.mxu0 0.0
    %1483 = vmatpush1.xpose.msra.mxu0 0.0
    %1484 = vmatprep.subr.mxu0 0.0
    %1485 = vmatpush1.xpose.msra.mxu0 0.0
    %1486 = vmatprep.subr.mxu0 0.0
    %1487 = vmatpush1.xpose.msra.mxu0 0.0
    %1488 = vmatprep.subr.mxu0 0.0
    %1489 = vmatpush1.xpose.msra.mxu0 0.0
    %1490 = vmatprep.subr.mxu0 0.0
    %1491 = vmatpush1.xpose.msra.mxu0 0.0
    %1492 = vmatprep.subr.mxu0 0.0
    %1493 = vmatpush1.xpose.msra.mxu0 0.0
    %1494 = vmatprep.subr.mxu0 0.0
    %1495 = vmatpush1.xpose.msra.mxu0 0.0
    %1496 = vmatprep.subr.mxu0 0.0
    %1497 = vmatpush1.xpose.msra.mxu0 0.0
    %1498 = vmatprep.subr.mxu0 0.0
    %1499 = vmatpush1.xpose.msra.mxu0 0.0
    %1500 = vmatprep.mubr.f32.mxu0 0.0
    %1501 = vmatmul.mubr.f32.gmra.mrb[0].mxu0 %v1434
    %v1502 = vpop.f32.mrb[0].mxu0
    %v1503 = vadd.f32 0.0, %v1502
    %v1504 = vpop.f32.mrb[0].mxu0
    %1505 = vdwg.mxu0
    %v1506 = vsel %vm403, %v1503, -inf
    %1507 = vmax.xlane.f32.xlu0 %v1506
    %v1508 = vpop.xlane.xlu0 %1507
    %v1509 = vsub.f32 %v1503, %v1508
    %v1510 = vmul.f32 %v1509, 1.442695
    %v1511 = vpow.pop %v1510
    %v1512 = vsel %vm403, %v1511, 0.0
    %1513 = vadd.xlane.f32.xlu0 %v1512
    %v1514 = vpop.xlane.xlu0 %1513
    %v1515 = vrcp.pop %v1514
    %v1516 = vmul.f32 %v1511, %v1515
    %v1518 = vsel %vm403, %v1516, 0
    %1520 = vmatprep.subr.mxu0 0.0
    %1521 = vmatpush1.msra.mxu0 %v326
    %1522 = vmatprep.subr.mxu0 0.0
    %1523 = vmatpush1.msra.mxu0 0.0
    %1524 = vmatprep.subr.mxu0 0.0
    %1525 = vmatpush1.msra.mxu0 0.0
    %1526 = vmatprep.subr.mxu0 0.0
    %1527 = vmatpush1.msra.mxu0 0.0
    %1528 = vmatprep.subr.mxu0 0.0
    %1529 = vmatpush1.msra.mxu0 0.0
    %1530 = vmatprep.subr.mxu0 0.0
    %1531 = vmatpush1.msra.mxu0 0.0
    %1532 = vmatprep.subr.mxu0 0.0
    %1533 = vmatpush1.msra.mxu0 0.0
    %1534 = vmatprep.subr.mxu0 0.0
    %1535 = vmatpush1.msra.mxu0 0.0
    %1536 = vmatprep.subr.mxu0 0.0
    %1537 = vmatpush1.msra.mxu0 0.0
    %1538 = vmatprep.subr.mxu0 0.0
    %1539 = vmatpush1.msra.mxu0 0.0
    %1540 = vmatprep.subr.mxu0 0.0
    %1541 = vmatpush1.msra.mxu0 0.0
    %1542 = vmatprep.subr.mxu0 0.0
    %1543 = vmatpush1.msra.mxu0 0.0
    %1544 = vmatprep.subr.mxu0 0.0
    %1545 = vmatpush1.msra.mxu0 0.0
    %1546 = vmatprep.subr.mxu0 0.0
    %1547 = vmatpush1.msra.mxu0 0.0
    %1548 = vmatprep.subr.mxu0 0.0
    %1549 = vmatpush1.msra.mxu0 0.0
    %1550 = vmatprep.subr.mxu0 0.0
    %1551 = vmatpush1.msra.mxu0 0.0
    %1552 = vmatprep.subr.mxu0 0.0
    %1553 = vmatpush1.msra.mxu0 0.0
    %1554 = vmatprep.subr.mxu0 0.0
    %1555 = vmatpush1.msra.mxu0 0.0
    %1556 = vmatprep.subr.mxu0 0.0
    %1557 = vmatpush1.msra.mxu0 0.0
    %1558 = vmatprep.subr.mxu0 0.0
    %1559 = vmatpush1.msra.mxu0 0.0
    %1560 = vmatprep.subr.mxu0 0.0
    %1561 = vmatpush1.msra.mxu0 0.0
    %1562 = vmatprep.subr.mxu0 0.0
    %1563 = vmatpush1.msra.mxu0 0.0
    %1564 = vmatprep.subr.mxu0 0.0
    %1565 = vmatpush1.msra.mxu0 0.0
    %1566 = vmatprep.subr.mxu0 0.0
    %1567 = vmatpush1.msra.mxu0 0.0
    %1568 = vmatprep.subr.mxu0 0.0
    %1569 = vmatpush1.msra.mxu0 0.0
    %1570 = vmatprep.subr.mxu0 0.0
    %1571 = vmatpush1.msra.mxu0 0.0
    %1572 = vmatprep.subr.mxu0 0.0
    %1573 = vmatpush1.msra.mxu0 0.0
    %1574 = vmatprep.subr.mxu0 0.0
    %1575 = vmatpush1.msra.mxu0 0.0
    %1576 = vmatprep.subr.mxu0 0.0
    %1577 = vmatpush1.msra.mxu0 0.0
    %1578 = vmatprep.subr.mxu0 0.0
    %1579 = vmatpush1.msra.mxu0 0.0
    %1580 = vmatprep.subr.mxu0 0.0
    %1581 = vmatpush1.msra.mxu0 0.0
    %1582 = vmatprep.subr.mxu0 0.0
    %1583 = vmatpush1.msra.mxu0 0.0
    %1584 = vmatprep.mubr.f32.mxu0 0.0
    %1585 = vmatmul.mubr.f32.gmra.mrb[0].mxu0 %v1518
    %v1586 = vpop.f32.mrb[0].mxu0
    %v1587 = vadd.f32 0.0, %v1586
    %v1588 = vpop.f32.mrb[0].mxu0
    %1589 = vdwg.mxu0
    %v1590 = vlaneseq
    %v1591 = vshrl.u32 %v1590, 7
    %v1592 = vadd.s32 %v1591, 8
    %v1593 = vmul.u32 %v1591, 4
    %v1594 = vmul.u32 %v1592, 4
    %vm1595 = vcmp.eq.s32.totalorder %v290, %v1593
    %vm1596 = vcmp.eq.s32.totalorder %v290, %v1594
    %v1597 = vsel %vm1595, 1, 0
    %v1598 = vsel %vm1596, 1, 0
    %v1599 = vcvt.s32.f32 %v1597
    %v1600 = vcvt.s32.f32 %v1598
    %vm1601 = vcmask 523264
    %v1603 = vsel %vm1601, %v1599, 0
    %v1606 = vsel %vm1601, %v1600, 0
    %1608 = vmatprep.subr.mxu0 0.0
    %1609 = vmatpush1.msra.mxu0 %v485
    %1610 = vmatprep.subr.mxu0 0.0
    %1611 = vmatpush1.msra.mxu0 %v642
    %1612 = vmatprep.subr.mxu0 0.0
    %1613 = vmatpush1.msra.mxu0 %v799
    %1614 = vmatprep.subr.mxu0 0.0
    %1615 = vmatpush1.msra.mxu0 %v956
    %1616 = vmatprep.subr.mxu0 0.0
    %1617 = vmatpush1.msra.mxu0 %v1116
    %1618 = vmatprep.subr.mxu0 0.0
    %1619 = vmatpush1.msra.mxu0 %v1273
    %1620 = vmatprep.subr.mxu0 0.0
    %1621 = vmatpush1.msra.mxu0 %v1430
    %1622 = vmatprep.subr.mxu0 0.0
    %1623 = vmatpush1.msra.mxu0 %v1587
    %1624 = vmatprep.subr.mxu0 0.0
    %1625 = vmatpush1.msra.mxu0 0.0
    %1626 = vmatprep.subr.mxu0 0.0
    %1627 = vmatpush1.msra.mxu0 0.0
    %1628 = vmatprep.subr.mxu0 0.0
    %1629 = vmatpush1.msra.mxu0 0.0
    %1630 = vmatprep.subr.mxu0 0.0
    %1631 = vmatpush1.msra.mxu0 0.0
    %1632 = vmatprep.subr.mxu0 0.0
    %1633 = vmatpush1.msra.mxu0 0.0
    %1634 = vmatprep.subr.mxu0 0.0
    %1635 = vmatpush1.msra.mxu0 0.0
    %1636 = vmatprep.subr.mxu0 0.0
    %1637 = vmatpush1.msra.mxu0 0.0
    %1638 = vmatprep.subr.mxu0 0.0
    %1639 = vmatpush1.msra.mxu0 0.0
    %1640 = vmatprep.subr.mxu0 0.0
    %1641 = vmatpush1.msra.mxu0 0.0
    %1642 = vmatprep.subr.mxu0 0.0
    %1643 = vmatpush1.msra.mxu0 0.0
    %1644 = vmatprep.subr.mxu0 0.0
    %1645 = vmatpush1.msra.mxu0 0.0
    %1646 = vmatprep.subr.mxu0 0.0
    %1647 = vmatpush1.msra.mxu0 0.0
    %1648 = vmatprep.subr.mxu0 0.0
    %1649 = vmatpush1.msra.mxu0 0.0
    %1650 = vmatprep.subr.mxu0 0.0
    %1651 = vmatpush1.msra.mxu0 0.0
    %1652 = vmatprep.subr.mxu0 0.0
    %1653 = vmatpush1.msra.mxu0 0.0
    %1654 = vmatprep.subr.mxu0 0.0
    %1655 = vmatpush1.msra.mxu0 0.0
    %1656 = vmatprep.subr.mxu0 0.0
    %1657 = vmatpush1.msra.mxu0 0.0
    %1658 = vmatprep.subr.mxu0 0.0
    %1659 = vmatpush1.msra.mxu0 0.0
    %1660 = vmatprep.subr.mxu0 0.0
    %1661 = vmatpush1.msra.mxu0 0.0
    %1662 = vmatprep.subr.mxu0 0.0
    %1663 = vmatpush1.msra.mxu0 0.0
    %1664 = vmatprep.subr.mxu0 0.0
    %1665 = vmatpush1.msra.mxu0 0.0
    %1666 = vmatprep.subr.mxu0 0.0
    %1667 = vmatpush1.msra.mxu0 0.0
    %1668 = vmatprep.subr.mxu0 0.0
    %1669 = vmatpush1.msra.mxu0 0.0
    %1670 = vmatprep.subr.mxu0 0.0
    %1671 = vmatpush1.msra.mxu0 0.0
    %1672 = vmatprep.mubr.f32.mxu0 0.0
    %1673 = vmatmul.mubr.f32.gmra.mrb[0].mxu0 %v1603
    %v1674 = vpop.f32.mrb[0].mxu0
    %v1675 = vadd.f32 0.0, %v1674
    %v1676 = vpop.f32.mrb[0].mxu0
    %1677 = vmatprep.mubr.f32.mxu0 0.0
    %1678 = vmatmul.mubr.f32.gmra.mrb[0].mxu0 %v1606
    %v1679 = vpop.f32.mrb[0].mxu0
    %v1680 = vadd.f32 0.0, %v1679
    %v1681 = vpop.f32.mrb[0].mxu0
    %1682 = vdwg.mxu0
    %v1683 = vadd.s32 %v1593, 1
    %v1684 = vadd.s32 %v1594, 1
    %vm1685 = vcmp.eq.s32.totalorder %v290, %v1683
    %vm1686 = vcmp.eq.s32.totalorder %v290, %v1684
    %v1687 = vsel %vm1685, 1, 0
    %v1688 = vsel %vm1686, 1, 0
    %v1689 = vcvt.s32.f32 %v1687
    %v1690 = vcvt.s32.f32 %v1688
    %v1692 = vsel %vm1601, %v1689, 0
    %v1695 = vsel %vm1601, %v1690, 0
    %1697 = vmatprep.subr.mxu0 0.0
    %1698 = vmatpush1.msra.mxu0 %v485
    %1699 = vmatprep.subr.mxu0 0.0
    %1700 = vmatpush1.msra.mxu0 %v642
    %1701 = vmatprep.subr.mxu0 0.0
    %1702 = vmatpush1.msra.mxu0 %v799
    %1703 = vmatprep.subr.mxu0 0.0
    %1704 = vmatpush1.msra.mxu0 %v956
    %1705 = vmatprep.subr.mxu0 0.0
    %1706 = vmatpush1.msra.mxu0 %v1116
    %1707 = vmatprep.subr.mxu0 0.0
    %1708 = vmatpush1.msra.mxu0 %v1273
    %1709 = vmatprep.subr.mxu0 0.0
    %1710 = vmatpush1.msra.mxu0 %v1430
    %1711 = vmatprep.subr.mxu0 0.0
    %1712 = vmatpush1.msra.mxu0 %v1587
    %1713 = vmatprep.subr.mxu0 0.0
    %1714 = vmatpush1.msra.mxu0 0.0
    %1715 = vmatprep.subr.mxu0 0.0
    %1716 = vmatpush1.msra.mxu0 0.0
    %1717 = vmatprep.subr.mxu0 0.0
    %1718 = vmatpush1.msra.mxu0 0.0
    %1719 = vmatprep.subr.mxu0 0.0
    %1720 = vmatpush1.msra.mxu0 0.0
    %1721 = vmatprep.subr.mxu0 0.0
    %1722 = vmatpush1.msra.mxu0 0.0
    %1723 = vmatprep.subr.mxu0 0.0
    %1724 = vmatpush1.msra.mxu0 0.0
    %1725 = vmatprep.subr.mxu0 0.0
    %1726 = vmatpush1.msra.mxu0 0.0
    %1727 = vmatprep.subr.mxu0 0.0
    %1728 = vmatpush1.msra.mxu0 0.0
    %1729 = vmatprep.subr.mxu0 0.0
    %1730 = vmatpush1.msra.mxu0 0.0
    %1731 = vmatprep.subr.mxu0 0.0
    %1732 = vmatpush1.msra.mxu0 0.0
    %1733 = vmatprep.subr.mxu0 0.0
    %1734 = vmatpush1.msra.mxu0 0.0
    %1735 = vmatprep.subr.mxu0 0.0
    %1736 = vmatpush1.msra.mxu0 0.0
    %1737 = vmatprep.subr.mxu0 0.0
    %1738 = vmatpush1.msra.mxu0 0.0
    %1739 = vmatprep.subr.mxu0 0.0
    %1740 = vmatpush1.msra.mxu0 0.0
    %1741 = vmatprep.subr.mxu0 0.0
    %1742 = vmatpush1.msra.mxu0 0.0
    %1743 = vmatprep.subr.mxu0 0.0
    %1744 = vmatpush1.msra.mxu0 0.0
    %1745 = vmatprep.subr.mxu0 0.0
    %1746 = vmatpush1.msra.mxu0 0.0
    %1747 = vmatprep.subr.mxu0 0.0
    %1748 = vmatpush1.msra.mxu0 0.0
    %1749 = vmatprep.subr.mxu0 0.0
    %1750 = vmatpush1.msra.mxu0 0.0
    %1751 = vmatprep.subr.mxu0 0.0
    %1752 = vmatpush1.msra.mxu0 0.0
    %1753 = vmatprep.subr.mxu0 0.0
    %1754 = vmatpush1.msra.mxu0 0.0
    %1755 = vmatprep.subr.mxu0 0.0
    %1756 = vmatpush1.msra.mxu0 0.0
    %1757 = vmatprep.subr.mxu0 0.0
    %1758 = vmatpush1.msra.mxu0 0.0
    %1759 = vmatprep.subr.mxu0 0.0
    %1760 = vmatpush1.msra.mxu0 0.0
    %1761 = vmatprep.mubr.f32.mxu0 0.0
    %1762 = vmatmul.mubr.f32.gmra.mrb[0].mxu0 %v1692
    %v1763 = vpop.f32.mrb[0].mxu0
    %v1764 = vadd.f32 0.0, %v1763
    %v1765 = vpop.f32.mrb[0].mxu0
    %1766 = vmatprep.mubr.f32.mxu0 0.0
    %1767 = vmatmul.mubr.f32.gmra.mrb[0].mxu0 %v1695
    %v1768 = vpop.f32.mrb[0].mxu0
    %v1769 = vadd.f32 0.0, %v1768
    %v1770 = vpop.f32.mrb[0].mxu0
    %1771 = vdwg.mxu0
    %v1772 = vadd.s32 %v1593, 2
    %v1773 = vadd.s32 %v1594, 2
    %vm1774 = vcmp.eq.s32.totalorder %v290, %v1772
    %vm1775 = vcmp.eq.s32.totalorder %v290, %v1773
    %v1776 = vsel %vm1774, 1, 0
    %v1777 = vsel %vm1775, 1, 0
    %v1778 = vcvt.s32.f32 %v1776
    %v1779 = vcvt.s32.f32 %v1777
    %v1781 = vsel %vm1601, %v1778, 0
    %v1784 = vsel %vm1601, %v1779, 0
    %1786 = vmatprep.subr.mxu0 0.0
    %1787 = vmatpush1.msra.mxu0 %v485
    %1788 = vmatprep.subr.mxu0 0.0
    %1789 = vmatpush1.msra.mxu0 %v642
    %1790 = vmatprep.subr.mxu0 0.0
    %1791 = vmatpush1.msra.mxu0 %v799
    %1792 = vmatprep.subr.mxu0 0.0
    %1793 = vmatpush1.msra.mxu0 %v956
    %1794 = vmatprep.subr.mxu0 0.0
    %1795 = vmatpush1.msra.mxu0 %v1116
    %1796 = vmatprep.subr.mxu0 0.0
    %1797 = vmatpush1.msra.mxu0 %v1273
    %1798 = vmatprep.subr.mxu0 0.0
    %1799 = vmatpush1.msra.mxu0 %v1430
    %1800 = vmatprep.subr.mxu0 0.0
    %1801 = vmatpush1.msra.mxu0 %v1587
    %1802 = vmatprep.subr.mxu0 0.0
    %1803 = vmatpush1.msra.mxu0 0.0
    %1804 = vmatprep.subr.mxu0 0.0
    %1805 = vmatpush1.msra.mxu0 0.0
    %1806 = vmatprep.subr.mxu0 0.0
    %1807 = vmatpush1.msra.mxu0 0.0
    %1808 = vmatprep.subr.mxu0 0.0
    %1809 = vmatpush1.msra.mxu0 0.0
    %1810 = vmatprep.subr.mxu0 0.0
    %1811 = vmatpush1.msra.mxu0 0.0
    %1812 = vmatprep.subr.mxu0 0.0
    %1813 = vmatpush1.msra.mxu0 0.0
    %1814 = vmatprep.subr.mxu0 0.0
    %1815 = vmatpush1.msra.mxu0 0.0
    %1816 = vmatprep.subr.mxu0 0.0
    %1817 = vmatpush1.msra.mxu0 0.0
    %1818 = vmatprep.subr.mxu0 0.0
    %1819 = vmatpush1.msra.mxu0 0.0
    %1820 = vmatprep.subr.mxu0 0.0
    %1821 = vmatpush1.msra.mxu0 0.0
    %1822 = vmatprep.subr.mxu0 0.0
    %1823 = vmatpush1.msra.mxu0 0.0
    %1824 = vmatprep.subr.mxu0 0.0
    %1825 = vmatpush1.msra.mxu0 0.0
    %1826 = vmatprep.subr.mxu0 0.0
    %1827 = vmatpush1.msra.mxu0 0.0
    %1828 = vmatprep.subr.mxu0 0.0
    %1829 = vmatpush1.msra.mxu0 0.0
    %1830 = vmatprep.subr.mxu0 0.0
    %1831 = vmatpush1.msra.mxu0 0.0
    %1832 = vmatprep.subr.mxu0 0.0
    %1833 = vmatpush1.msra.mxu0 0.0
    %1834 = vmatprep.subr.mxu0 0.0
    %1835 = vmatpush1.msra.mxu0 0.0
    %1836 = vmatprep.subr.mxu0 0.0
    %1837 = vmatpush1.msra.mxu0 0.0
    %1838 = vmatprep.subr.mxu0 0.0
    %1839 = vmatpush1.msra.mxu0 0.0
    %1840 = vmatprep.subr.mxu0 0.0
    %1841 = vmatpush1.msra.mxu0 0.0
    %1842 = vmatprep.subr.mxu0 0.0
    %1843 = vmatpush1.msra.mxu0 0.0
    %1844 = vmatprep.subr.mxu0 0.0
    %1845 = vmatpush1.msra.mxu0 0.0
    %1846 = vmatprep.subr.mxu0 0.0
    %1847 = vmatpush1.msra.mxu0 0.0
    %1848 = vmatprep.subr.mxu0 0.0
    %1849 = vmatpush1.msra.mxu0 0.0
    %1850 = vmatprep.mubr.f32.mxu0 0.0
    %1851 = vmatmul.mubr.f32.gmra.mrb[0].mxu0 %v1781
    %v1852 = vpop.f32.mrb[0].mxu0
    %v1853 = vadd.f32 0.0, %v1852
    %v1854 = vpop.f32.mrb[0].mxu0
    %1855 = vmatprep.mubr.f32.mxu0 0.0
    %1856 = vmatmul.mubr.f32.gmra.mrb[0].mxu0 %v1784
    %v1857 = vpop.f32.mrb[0].mxu0
    %v1858 = vadd.f32 0.0, %v1857
    %v1859 = vpop.f32.mrb[0].mxu0
    %1860 = vdwg.mxu0
    %v1861 = vadd.s32 %v1593, 3
    %v1862 = vadd.s32 %v1594, 3
    %vm1863 = vcmp.eq.s32.totalorder %v290, %v1861
    %vm1864 = vcmp.eq.s32.totalorder %v290, %v1862
    %v1865 = vsel %vm1863, 1, 0
    %v1866 = vsel %vm1864, 1, 0
    %v1867 = vcvt.s32.f32 %v1865
    %v1868 = vcvt.s32.f32 %v1866
    %v1870 = vsel %vm1601, %v1867, 0
    %v1873 = vsel %vm1601, %v1868, 0
    %1875 = vmatprep.subr.mxu0 0.0
    %1876 = vmatpush1.msra.mxu0 %v485
    %1877 = vmatprep.subr.mxu0 0.0
    %1878 = vmatpush1.msra.mxu0 %v642
    %1879 = vmatprep.subr.mxu0 0.0
    %1880 = vmatpush1.msra.mxu0 %v799
    %1881 = vmatprep.subr.mxu0 0.0
    %1882 = vmatpush1.msra.mxu0 %v956
    %1883 = vmatprep.subr.mxu0 0.0
    %1884 = vmatpush1.msra.mxu0 %v1116
    %1885 = vmatprep.subr.mxu0 0.0
    %1886 = vmatpush1.msra.mxu0 %v1273
    %1887 = vmatprep.subr.mxu0 0.0
    %1888 = vmatpush1.msra.mxu0 %v1430
    %1889 = vmatprep.subr.mxu0 0.0
    %1890 = vmatpush1.msra.mxu0 %v1587
    %1891 = vmatprep.subr.mxu0 0.0
    %1892 = vmatpush1.msra.mxu0 0.0
    %1893 = vmatprep.subr.mxu0 0.0
    %1894 = vmatpush1.msra.mxu0 0.0
    %1895 = vmatprep.subr.mxu0 0.0
    %1896 = vmatpush1.msra.mxu0 0.0
    %1897 = vmatprep.subr.mxu0 0.0
    %1898 = vmatpush1.msra.mxu0 0.0
    %1899 = vmatprep.subr.mxu0 0.0
    %1900 = vmatpush1.msra.mxu0 0.0
    %1901 = vmatprep.subr.mxu0 0.0
    %1902 = vmatpush1.msra.mxu0 0.0
    %1903 = vmatprep.subr.mxu0 0.0
    %1904 = vmatpush1.msra.mxu0 0.0
    %1905 = vmatprep.subr.mxu0 0.0
    %1906 = vmatpush1.msra.mxu0 0.0
    %1907 = vmatprep.subr.mxu0 0.0
    %1908 = vmatpush1.msra.mxu0 0.0
    %1909 = vmatprep.subr.mxu0 0.0
    %1910 = vmatpush1.msra.mxu0 0.0
    %1911 = vmatprep.subr.mxu0 0.0
    %1912 = vmatpush1.msra.mxu0 0.0
    %1913 = vmatprep.subr.mxu0 0.0
    %1914 = vmatpush1.msra.mxu0 0.0
    %1915 = vmatprep.subr.mxu0 0.0
    %1916 = vmatpush1.msra.mxu0 0.0
    %1917 = vmatprep.subr.mxu0 0.0
    %1918 = vmatpush1.msra.mxu0 0.0
    %1919 = vmatprep.subr.mxu0 0.0
    %1920 = vmatpush1.msra.mxu0 0.0
    %1921 = vmatprep.subr.mxu0 0.0
    %1922 = vmatpush1.msra.mxu0 0.0
    %1923 = vmatprep.subr.mxu0 0.0
    %1924 = vmatpush1.msra.mxu0 0.0
    %1925 = vmatprep.subr.mxu0 0.0
    %1926 = vmatpush1.msra.mxu0 0.0
    %1927 = vmatprep.subr.mxu0 0.0
    %1928 = vmatpush1.msra.mxu0 0.0
    %1929 = vmatprep.subr.mxu0 0.0
    %1930 = vmatpush1.msra.mxu0 0.0
    %1931 = vmatprep.subr.mxu0 0.0
    %1932 = vmatpush1.msra.mxu0 0.0
    %1933 = vmatprep.subr.mxu0 0.0
    %1934 = vmatpush1.msra.mxu0 0.0
    %1935 = vmatprep.subr.mxu0 0.0
    %1936 = vmatpush1.msra.mxu0 0.0
    %1937 = vmatprep.subr.mxu0 0.0
    %1938 = vmatpush1.msra.mxu0 0.0
    %1939 = vmatprep.mubr.f32.mxu0 0.0
    %1940 = vmatmul.mubr.f32.gmra.mrb[0].mxu0 %v1870
    %v1941 = vpop.f32.mrb[0].mxu0
    %v1942 = vadd.f32 0.0, %v1941
    %v1943 = vpop.f32.mrb[0].mxu0
    %1944 = vmatprep.mubr.f32.mxu0 0.0
    %1945 = vmatmul.mubr.f32.gmra.mrb[0].mxu0 %v1873
    %v1946 = vpop.f32.mrb[0].mxu0
    %v1947 = vadd.f32 0.0, %v1946
    %v1948 = vpop.f32.mrb[0].mxu0
    %1949 = vdwg.mxu0
    %1952 = vrot.lane.b32.xlu0 %v1764, 32
    %v1953 = vpop.permute.xlu0 %1952
    %1954 = vrot.lane.b32.xlu0 %v1769, 32
    %v1955 = vpop.permute.xlu0 %1954
    %1960 = vrot.lane.b32.xlu0 %v1853, 64
    %v1961 = vpop.permute.xlu0 %1960
    %1962 = vrot.lane.b32.xlu0 %v1858, 64
    %v1963 = vpop.permute.xlu0 %1962
    %1968 = vrot.lane.b32.xlu0 %v1942, 96
    %v1969 = vpop.permute.xlu0 %1968
    %1970 = vrot.lane.b32.xlu0 %v1947, 96
    %v1971 = vpop.permute.xlu0 %1970
    %v1974 = vsel %vm33, %v1675, %v1953
    %v1975 = vsel %vm33, %v1680, %v1955
    %v1976 = vsel %vm1601, %v1974, %v1961
    %v1977 = vsel %vm1601, %v1975, %v1963
    %vm1978 = vcmask 785408
    %v1979 = vsel %vm1978, %v1976, %v1969
    %v1980 = vsel %vm1978, %v1977, %v1971
    %v1981 = vld [vmem:[%s6] sm:$0xff]
    %v1982 = vld [vmem:[%s6 + $0x8] sm:$0xff]
    %v1983 = vld [vmem:[%s6 + $0x10] sm:$0xff]
    %v1984 = vld [vmem:[%s6 + $0x18] sm:$0xff]
    %v1985 = vld [vmem:[%s6 + $0x20] sm:$0xff]
    %v1986 = vld [vmem:[%s6 + $0x28] sm:$0xff]
    %v1987 = vld [vmem:[%s6 + $0x30] sm:$0xff]
    %v1988 = vld [vmem:[%s6 + $0x38] sm:$0xff]
    %v1989 = vld [vmem:[%s6 + $0x40] sm:$0xff]
    %v1990 = vld [vmem:[%s6 + $0x48] sm:$0xff]
    %v1991 = vld [vmem:[%s6 + $0x50] sm:$0xff]
    %v1992 = vld [vmem:[%s6 + $0x58] sm:$0xff]
    %v1993 = vld [vmem:[%s6 + $0x60] sm:$0xff]
    %v1994 = vld [vmem:[%s6 + $0x68] sm:$0xff]
    %v1995 = vld [vmem:[%s6 + $0x70] sm:$0xff]
    %v1996 = vld [vmem:[%s6 + $0x78] sm:$0xff]
    %1997 = vmatprep.subr.mxu0 0.0
    %1998 = vmatpush1.msra.mxu0 %v1981
    %1999 = vmatprep.subr.mxu0 0.0
    %2000 = vmatpush1.msra.mxu0 %v1982
    %2001 = vmatprep.subr.mxu0 0.0
    %2002 = vmatpush1.msra.mxu0 %v1983
    %2003 = vmatprep.subr.mxu0 0.0
    %2004 = vmatpush1.msra.mxu0 %v1984
    %2005 = vmatprep.subr.mxu0 0.0
    %2006 = vmatpush1.msra.mxu0 %v1985
    %2007 = vmatprep.subr.mxu0 0.0
    %2008 = vmatpush1.msra.mxu0 %v1986
    %2009 = vmatprep.subr.mxu0 0.0
    %2010 = vmatpush1.msra.mxu0 %v1987
    %2011 = vmatprep.subr.mxu0 0.0
    %2012 = vmatpush1.msra.mxu0 %v1988
    %2013 = vmatprep.subr.mxu0 0.0
    %2014 = vmatpush1.msra.mxu0 %v1989
    %2015 = vmatprep.subr.mxu0 0.0
    %2016 = vmatpush1.msra.mxu0 %v1990
    %2017 = vmatprep.subr.mxu0 0.0
    %2018 = vmatpush1.msra.mxu0 %v1991
    %2019 = vmatprep.subr.mxu0 0.0
    %2020 = vmatpush1.msra.mxu0 %v1992
    %2021 = vmatprep.subr.mxu0 0.0
    %2022 = vmatpush1.msra.mxu0 %v1993
    %2023 = vmatprep.subr.mxu0 0.0
    %2024 = vmatpush1.msra.mxu0 %v1994
    %2025 = vmatprep.subr.mxu0 0.0
    %2026 = vmatpush1.msra.mxu0 %v1995
    %2027 = vmatprep.subr.mxu0 0.0
    %2028 = vmatpush1.msra.mxu0 %v1996
    %2029 = vmatprep.subr.mxu0 0.0
    %2030 = vmatpush1.msra.mxu0 0.0
    %2031 = vmatprep.subr.mxu0 0.0
    %2032 = vmatpush1.msra.mxu0 0.0
    %2033 = vmatprep.subr.mxu0 0.0
    %2034 = vmatpush1.msra.mxu0 0.0
    %2035 = vmatprep.subr.mxu0 0.0
    %2036 = vmatpush1.msra.mxu0 0.0
    %2037 = vmatprep.subr.mxu0 0.0
    %2038 = vmatpush1.msra.mxu0 0.0
    %2039 = vmatprep.subr.mxu0 0.0
    %2040 = vmatpush1.msra.mxu0 0.0
    %2041 = vmatprep.subr.mxu0 0.0
    %2042 = vmatpush1.msra.mxu0 0.0
    %2043 = vmatprep.subr.mxu0 0.0
    %2044 = vmatpush1.msra.mxu0 0.0
    %2045 = vmatprep.subr.mxu0 0.0
    %2046 = vmatpush1.msra.mxu0 0.0
    %2047 = vmatprep.subr.mxu0 0.0
    %2048 = vmatpush1.msra.mxu0 0.0
    %2049 = vmatprep.subr.mxu0 0.0
    %2050 = vmatpush1.msra.mxu0 0.0
    %2051 = vmatprep.subr.mxu0 0.0
    %2052 = vmatpush1.msra.mxu0 0.0
    %2053 = vmatprep.subr.mxu0 0.0
    %2054 = vmatpush1.msra.mxu0 0.0
    %2055 = vmatprep.subr.mxu0 0.0
    %2056 = vmatpush1.msra.mxu0 0.0
    %2057 = vmatprep.subr.mxu0 0.0
    %2058 = vmatpush1.msra.mxu0 0.0
    %2059 = vmatprep.subr.mxu0 0.0
    %2060 = vmatpush1.msra.mxu0 0.0
    %2061 = vmatprep.mubr.f32.mxu0 0.0
    %2062 = vmatmul.mubr.f32.gmra.mrb[0].mxu0 %v1979
    %v2063 = vpop.f32.mrb[0].mxu0
    %v2064 = vadd.f32 0.0, %v2063
    %v2065 = vpop.f32.mrb[0].mxu0
    %2066 = vmatprep.mubr.f32.mxu0 0.0
    %2067 = vmatmul.mubr.f32.gmra.mrb[0].mxu0 %v1980
    %v2068 = vpop.f32.mrb[0].mxu0
    %v2069 = vadd.f32 0.0, %v2068
    %v2070 = vpop.f32.mrb[0].mxu0
    %2071 = vdwg.mxu0
    %2072 = vst.msk [vmem:[#allocation2] sm:$0xff] %vm33, %v2064
    %2073 = vst.msk [vmem:[#allocation2 + $0x8] sm:$0xff] %vm33, %v2069
    // Predicated region
    $region30: #{multi_head_attention.1} parent=1 // pred_check
      _
    $region31: #{multi_head_attention.1} parent=1 // pred_check_branch
      %2075 = sbr.rel (0) target = $region33
    $region32: #{multi_head_attention.1} parent=1 // pred_region
      %s2077 = ssub.s32 256, 256
      %2078 = vsyncadd [#allocation3], %s2077
      %s2079 = sshll.u32 [#allocation2], 4
      %s2080 = int_to_ptr.vmem [resolvable:$true] %s2079
      %2085 = dma.vmem_to_hbm [thread:$0]  %s2080, 256, %s7, [#allocation3], 128, 128, 8
    $region33: #{multi_head_attention.1} parent=1 // pred_fallthru
      _
    // Predicated region
    $region34: #{multi_head_attention.1} parent=1 // pred_check
      _
    $region35: #{multi_head_attention.1} parent=1 // pred_check_branch
      %2087 = sbr.rel (0) target = $region37
    $region36: #{multi_head_attention.1} parent=1 // pred_region
      %2088 = dma.done [#allocation3], 256
    $region37: #{multi_head_attention.1} parent=1 // pred_fallthru
      _
    %2089 = vsyncpa [#allocation3], 1

</llo_original>
